<compile_context>
chip_gen: v6e
topology: v6e:2x2x1
jax: 0.10.0
libtpu: 0.0.40
codegen_flags: <defaults>
</compile_context>

<pallas_src>
import numpy as np
import jax
import jax.numpy as jnp
from jax import lax
from jax.experimental import pallas as pl
from jax.experimental.pallas import tpu as pltpu

BN_EPS = 1e-5
NUM_CLASSES = 10
CONV_CFG = [(5, 2, 2), (3, 2, 1), (3, 2, 1), (3, 2, 1)]   # (kernel, stride, pad)
CONV_CH = [(2, 8), (8, 16), (16, 32), (32, 64)]           # (C_in, C_out)
LANES = 128
PBLK = 16   # rows reserved per layer for (bias, gamma, beta); 16 keeps bf16-tile alignment


# ---------------------------------------------------------------------------
# Static geometry + slab row offsets (shared by the host packer and the kernel)
# ---------------------------------------------------------------------------
def layer_geometry(H0, W0):
    geo, off = [], 0
    Hin, Win, Cin = H0, W0, CONV_CH[0][0]
    for (k, s, p), (cin, cout) in zip(CONV_CFG, CONV_CH):
        assert cin == Cin and Win * Cin <= LANES
        Ho = (Hin + 2 * p - k) // s + 1
        Wo = (Win + 2 * p - k) // s + 1
        assert Wo * cout == LANES, "layout assumes 128 output lanes per layer"
        geo.append(dict(k=k, s=s, p=p, Hin=Hin, Win=Win, Cin=Cin,
                        Ho=Ho, Wo=Wo, Cout=cout, Hpad=Hin + 2 * p,
                        off_m=off, off_bgb=off + k * LANES,
                        off_g=off + k * LANES + PBLK))
        off += k * LANES + PBLK + LANES
        Hin, Win, Cin = Ho, Wo, cout
    head = dict(H5=Hin, W5=Win, C5=Cin, off_w=off, off_b=off + LANES)
    return geo, head, off + LANES + PBLK


# ---------------------------------------------------------------------------
# The single fused Pallas kernel
# ---------------------------------------------------------------------------
def make_kernel(geo, head, N):
    f32, bf16 = jnp.float32, jnp.bfloat16

    def kernel(x_ref, slab_ref, out_ref, *bufs):
        # Activation layout everywhere: [N*Hpad, 128] (channels-last, W*C on lanes),
        # H zero-pad rows baked into the per-layer input buffers.
        in_refs = (x_ref,) + bufs
        act = None
        for li, g in enumerate(geo):
            src = in_refs[li]
            k, s, Ho, Hpad = g["k"], g["s"], g["Ho"], g["Hpad"]

            # Conv2d(stride, pad): kh strided row-window loads (no SelH matmuls),
            # lane-concat, then ONE MXU matmul against the stacked M_cat.
            per_im = []
            for n in range(N):
                wins = [src[pl.ds(n * Hpad + di, Ho, stride=s), :] for di in range(k)]
                per_im.append(jnp.concatenate(wins, axis=1))        # [Ho, k*128]
            rows_cat = (per_im[0] if N == 1
                        else jnp.concatenate(per_im, axis=0)).astype(bf16)
            m_cat = slab_ref[g["off_m"]:g["off_m"] + k * LANES, :]  # [k*128, 128] bf16
            y = jnp.dot(rows_cat, m_cat, preferred_element_type=f32)  # [N*Ho, 128]

            ob = g["off_bgb"]
            bias = slab_ref[ob + 0:ob + 1, :].astype(f32)
            gamma = slab_ref[ob + 1:ob + 2, :].astype(f32)
            beta = slab_ref[ob + 2:ob + 3, :].astype(f32)
            y = jnp.maximum(y + bias, 0.0)                          # bias + ReLU (f32)

            # Train-mode BatchNorm2d, single pass; BOTH stats through ONE matmul.
            stats = jnp.concatenate([jnp.sum(y, axis=0, keepdims=True),
                                     jnp.sum(y * y, axis=0, keepdims=True)], axis=0)
            g_mat = slab_ref[g["off_g"]:g["off_g"] + LANES, :].astype(f32)
            red = jnp.dot(stats, g_mat, preferred_element_type=f32)
            red = red * (1.0 / float(N * g["Ho"] * g["Wo"]))        # batch-indep consts
            mean_t, msq_t = red[0:1, :], red[1:2, :]
            scale = gamma * lax.rsqrt(msq_t - mean_t * mean_t + BN_EPS)
            shift = beta - mean_t * scale
            act = y * scale + shift                                 # [N*Ho, 128] f32
            # TODO(synk): BatchNorm running_mean/running_var updates (module state) are
            # not emitted; the train-mode forward output does not depend on them.

            # Build the zero-padded VMEM input buffer for the next conv layer.
            if li + 1 < len(geo):
                nxt = geo[li + 1]
                dst = in_refs[li + 1]
                dst[...] = jnp.zeros(dst.shape, f32)
                for n in range(N):
                    r0 = n * nxt["Hpad"] + nxt["p"]
                    dst[r0:r0 + Ho, :] = act[n * Ho:(n + 1) * Ho, :]

        # Head: AdaptiveAvgPool2d(1) + Linear (both spatial means folded into w_head).
        H5 = head["H5"]
        pooled = jnp.concatenate(
            [sum(act[n * H5 + h:n * H5 + h + 1, :] for h in range(H5))
             for n in range(N)], axis=0)                            # [N, 128] row-sums
        w_head = slab_ref[head["off_w"]:head["off_w"] + LANES, :]   # bf16, cols 0..9 used
        b_head = slab_ref[head["off_b"]:head["off_b"] + 1, :].astype(f32)
        logits = jnp.dot(pooled.astype(bf16), w_head,
                         preferred_element_type=f32) + b_head       # [N, 128]
        out_ref[...] = logits[:, :NUM_CLASSES]

    return kernel


# ---------------------------------------------------------------------------
# pallas_call wrapper
# ---------------------------------------------------------------------------
@jax.jit
def audio_classifier_forward(x_nchw, slab):
    """x_nchw: [N, 2, H, W] float32 (PyTorch NCHW).  Returns logits [N, 10]."""
    N, C0, H0, W0 = x_nchw.shape
    assert C0 == CONV_CH[0][0]
    geo, head, _ = layer_geometry(H0, W0)
    g0 = geo[0]
    # One-time relayout of the network input (XLA side): NCHW -> channels-last
    # [N*Hpad0, 128] with zero rows for the H padding and zero lanes W0*C0..127.
    x = jnp.transpose(x_nchw, (0, 2, 3, 1)).reshape(N, H0, W0 * C0)
    x = jnp.pad(x, ((0, 0), (g0["p"], g0["p"]), (0, LANES - W0 * C0)))
    x = x.reshape(N * g0["Hpad"], LANES)

    return pl.pallas_call(
        make_kernel(geo, head, N),
        out_shape=jax.ShapeDtypeStruct((N, NUM_CLASSES), jnp.float32),
        grid=(1,),
        in_specs=[pl.BlockSpec(x.shape, lambda i: (0, 0)),
                  pl.BlockSpec(slab.shape, lambda i: (0, 0))],
        out_specs=pl.BlockSpec((N, NUM_CLASSES), lambda i: (0, 0)),
        scratch_shapes=[pltpu.VMEM((N * g["Hpad"], LANES), jnp.float32)
                        for g in geo[1:]],
        # Single grid step: the whole net (~0.65 MiB constants, <40 KiB activations)
        # fits VMEM with large margin.  For production batch sizes: add a grid axis
        # over row-tiles of N with dimension_semantics=("parallel", ...) (requires
        # cross-step BN accumulation) so v7x's second TensorCore is used and VMEM
        # usage stays flat in batch; constants here are already batch-independent.
        compiler_params=pltpu.CompilerParams(dimension_semantics=("arbitrary",)),
    )(x, slab)


# ---------------------------------------------------------------------------
# Host-side constant packing: ONE bf16 slab holds every weight-derived constant.
# ---------------------------------------------------------------------------
def build_constants(params, H0, W0):
    geo, head, rows = layer_geometry(H0, W0)
    slab = np.zeros((rows, LANES), np.float32)
    for (wt, b, gamma, beta), g in zip(params["convs"], geo):
        wt = np.asarray(wt, np.float32)            # [Cout, Cin, kh, kw] (PyTorch layout)
        k, s, p = g["k"], g["s"], g["p"]
        Cin, Cout, Win, Wo = g["Cin"], g["Cout"], g["Win"], g["Wo"]
        # M_cat[di*128 + wi*Cin + ci, wo*Cout + co] = W[co, ci, di, wi - s*wo + p]
        for di in range(k):
            base = g["off_m"] + di * LANES
            for wo in range(Wo):
                for dj in range(k):
                    wi = s * wo + dj - p
                    if 0 <= wi < Win:
                        slab[base + wi * Cin: base + (wi + 1) * Cin,
                             wo * Cout:(wo + 1) * Cout] = wt[:, :, di, dj].T
        slab[g["off_bgb"] + 0, :] = np.tile(np.asarray(b, np.float32), Wo)
        slab[g["off_bgb"] + 1, :] = np.tile(np.asarray(gamma, np.float32), Wo)
        slab[g["off_bgb"] + 2, :] = np.tile(np.asarray(beta, np.float32), Wo)
        # Un-normalized channel-grouping matrix (0/1, exact in bf16).
        slab[g["off_g"]:g["off_g"] + LANES, :] = np.kron(
            np.ones((Wo, Wo), np.float32), np.eye(Cout, dtype=np.float32))
    # Head: mean over h and w folded into the Linear weight; bias in its own row.
    W5, H5, C5 = head["W5"], head["H5"], head["C5"]
    slab[head["off_w"]:head["off_w"] + W5 * C5, :NUM_CLASSES] = (
        np.tile(np.asarray(params["lin_w"], np.float32), (W5, 1)) / float(W5 * H5))
    slab[head["off_b"], :NUM_CLASSES] = np.asarray(params["lin_b"], np.float32)
    return jnp.asarray(slab).astype(jnp.bfloat16)


# ---------------------------------------------------------------------------
# Parameter init (mirrors the PyTorch module's __init__)
# ---------------------------------------------------------------------------
def init_params(key):
    convs = []
    a = 0.1
    for (cin, cout), (k, s, p) in zip(CONV_CH, CONV_CFG):
        key, sub = jax.random.split(key)
        fan_in = cin * k * k
        gain = (2.0 / (1.0 + a * a)) ** 0.5            # kaiming_normal_(a=0.1)
        std = gain / fan_in ** 0.5
        w = jax.random.normal(sub, (cout, cin, k, k), jnp.float32) * std
        b = jnp.zeros((cout,), jnp.float32)            # conv bias zeroed
        gamma = jnp.ones((cout,), jnp.float32)         # BN weight
        beta = jnp.zeros((cout,), jnp.float32)         # BN bias
        convs.append((w, b, gamma, beta))
    key, kw_, kb_ = jax.random.split(key, 3)
    bound = 1.0 / (64 ** 0.5)                          # nn.Linear default init
    lin_w = jax.random.uniform(kw_, (64, NUM_CLASSES), jnp.float32, -bound, bound)
    lin_b = jax.random.uniform(kb_, (NUM_CLASSES,), jnp.float32, -bound, bound)
    return {"convs": convs, "lin_w": lin_w, "lin_b": lin_b}


# ---------------------------------------------------------------------------
# Pure-JAX reference (in-script correctness check)
# ---------------------------------------------------------------------------
def reference_forward(x, params):
    h = x
    for (w, b, gamma, beta), (k, s, p) in zip(params["convs"], CONV_CFG):
        h = lax.conv_general_dilated(
            h, w, window_strides=(s, s), padding=((p, p), (p, p)),
            dimension_numbers=("NCHW", "OIHW", "NCHW"),
            precision=jax.lax.Precision.HIGHEST)
        h = h + b.reshape(1, -1, 1, 1)
        h = jnp.maximum(h, 0.0)
        mean = jnp.mean(h, axis=(0, 2, 3), keepdims=True)
        var = jnp.mean((h - mean) ** 2, axis=(0, 2, 3), keepdims=True)
        h = ((h - mean) / jnp.sqrt(var + BN_EPS) * gamma.reshape(1, -1, 1, 1)
             + beta.reshape(1, -1, 1, 1))
    pooled = jnp.mean(h, axis=(2, 3))
    return jnp.dot(pooled, params["lin_w"],
                   precision=jax.lax.Precision.HIGHEST) + params["lin_b"]


if __name__ == "__main__":
    key = jax.random.PRNGKey(0)
    key, xk = jax.random.split(key)
    # small spectrogram-like input: batch=2, channels=2 (module spec), 32x32
    x = jax.random.normal(xk, (2, 2, 32, 32), jnp.float32)
    params = init_params(key)
    slab = build_constants(params, 32, 32)

    out = jax.block_until_ready(audio_classifier_forward(x, slab))
    assert out.shape == (2, NUM_CLASSES), out.shape

    ref = reference_forward(x, params)
    err = float(jnp.max(jnp.abs(out - ref)))
    assert err < 2e-2, f"max abs error vs reference: {err}"
    print("KERNEL_OK")
</pallas_src>

<mosaic_0001>
module attributes {stable_mosaic.version = 11 : i64} {
  func.func @kernel(%arg0: i32, %arg1: memref<72x128xf32, #tpu.memory_space<vmem>>, %arg2: memref<2512x128xbf16, #tpu.memory_space<vmem>>, %arg3: memref<2x10xf32, #tpu.memory_space<vmem>>, %arg4: memref<36x128xf32, #tpu.memory_space<vmem>>, %arg5: memref<20x128xf32, #tpu.memory_space<vmem>>, %arg6: memref<12x128xf32, #tpu.memory_space<vmem>>) attributes {dimension_semantics = [#tpu.dimension_semantics<arbitrary>], iteration_bounds = array<i64: 1>, scalar_prefetch = 0 : i64, scratch_operands = 3 : i64, tpu.core_type = #tpu.core_type<tc>, window_params = [{pipeline_mode = #tpu.pipeline_mode<synchronous>, transform_indices = @transform_0, window_bounds = array<i64: 72, 128>}, {pipeline_mode = #tpu.pipeline_mode<synchronous>, transform_indices = @transform_1, window_bounds = array<i64: 2512, 128>}, {pipeline_mode = #tpu.pipeline_mode<synchronous>, transform_indices = @transform_2, window_bounds = array<i64: 2, 10>}]} {
    %c0 = arith.constant 0 : index
    %c0_0 = arith.constant 0 : index
    %0 = tpu.strided_load %arg1[%c0, %c0_0] {strides = array<i32: 2, 1>} : memref<72x128xf32, #tpu.memory_space<vmem>>, vector<16x128xf32>
    %c1 = arith.constant 1 : index
    %c0_1 = arith.constant 0 : index
    %1 = tpu.strided_load %arg1[%c1, %c0_1] {strides = array<i32: 2, 1>} : memref<72x128xf32, #tpu.memory_space<vmem>>, vector<16x128xf32>
    %c2 = arith.constant 2 : index
    %c0_2 = arith.constant 0 : index
    %2 = tpu.strided_load %arg1[%c2, %c0_2] {strides = array<i32: 2, 1>} : memref<72x128xf32, #tpu.memory_space<vmem>>, vector<16x128xf32>
    %c3 = arith.constant 3 : index
    %c0_3 = arith.constant 0 : index
    %3 = tpu.strided_load %arg1[%c3, %c0_3] {strides = array<i32: 2, 1>} : memref<72x128xf32, #tpu.memory_space<vmem>>, vector<16x128xf32>
    %c4 = arith.constant 4 : index
    %c0_4 = arith.constant 0 : index
    %4 = tpu.strided_load %arg1[%c4, %c0_4] {strides = array<i32: 2, 1>} : memref<72x128xf32, #tpu.memory_space<vmem>>, vector<16x128xf32>
    %5 = tpu.concatenate %0, %1, %2, %3, %4 in 1 : vector<16x128xf32>, vector<16x128xf32>, vector<16x128xf32>, vector<16x128xf32>, vector<16x128xf32> -> vector<16x640xf32>
    %c36 = arith.constant 36 : index
    %c0_5 = arith.constant 0 : index
    %6 = tpu.strided_load %arg1[%c36, %c0_5] {strides = array<i32: 2, 1>} : memref<72x128xf32, #tpu.memory_space<vmem>>, vector<16x128xf32>
    %c37 = arith.constant 37 : index
    %c0_6 = arith.constant 0 : index
    %7 = tpu.strided_load %arg1[%c37, %c0_6] {strides = array<i32: 2, 1>} : memref<72x128xf32, #tpu.memory_space<vmem>>, vector<16x128xf32>
    %c38 = arith.constant 38 : index
    %c0_7 = arith.constant 0 : index
    %8 = tpu.strided_load %arg1[%c38, %c0_7] {strides = array<i32: 2, 1>} : memref<72x128xf32, #tpu.memory_space<vmem>>, vector<16x128xf32>
    %c39 = arith.constant 39 : index
    %c0_8 = arith.constant 0 : index
    %9 = tpu.strided_load %arg1[%c39, %c0_8] {strides = array<i32: 2, 1>} : memref<72x128xf32, #tpu.memory_space<vmem>>, vector<16x128xf32>
    %c40 = arith.constant 40 : index
    %c0_9 = arith.constant 0 : index
    %10 = tpu.strided_load %arg1[%c40, %c0_9] {strides = array<i32: 2, 1>} : memref<72x128xf32, #tpu.memory_space<vmem>>, vector<16x128xf32>
    %11 = tpu.concatenate %6, %7, %8, %9, %10 in 1 : vector<16x128xf32>, vector<16x128xf32>, vector<16x128xf32>, vector<16x128xf32>, vector<16x128xf32> -> vector<16x640xf32>
    %12 = tpu.concatenate %5, %11 in 0 : vector<16x640xf32>, vector<16x640xf32> -> vector<32x640xf32>
    %13 = arith.truncf %12 : vector<32x640xf32> to vector<32x640xbf16>
    %c0_10 = arith.constant 0 : index
    %c0_11 = arith.constant 0 : index
    %14 = vector.load %arg2[%c0_10, %c0_11] : memref<2512x128xbf16, #tpu.memory_space<vmem>>, vector<640x128xbf16>
    %cst = arith.constant dense<0.000000e+00> : vector<32x128xf32>
    %15 = tpu.matmul %13, %14, %cst {dimension_numbers = #tpu.dot_dimension_numbers<[1], [0], [0], [1], [0, 0, 1, 1], [], []>} : vector<32x640xbf16>, vector<640x128xbf16>, vector<32x128xf32> -> vector<32x128xf32>
    %c640 = arith.constant 640 : index
    %c0_12 = arith.constant 0 : index
    %16 = vector.load %arg2[%c640, %c0_12] : memref<2512x128xbf16, #tpu.memory_space<vmem>>, vector<1x128xbf16>
    %17 = arith.extf %16 : vector<1x128xbf16> to vector<1x128xf32>
    %c641 = arith.constant 641 : index
    %c0_13 = arith.constant 0 : index
    %18 = vector.load %arg2[%c641, %c0_13] : memref<2512x128xbf16, #tpu.memory_space<vmem>>, vector<1x128xbf16>
    %19 = arith.extf %18 : vector<1x128xbf16> to vector<1x128xf32>
    %c642 = arith.constant 642 : index
    %c0_14 = arith.constant 0 : index
    %20 = vector.load %arg2[%c642, %c0_14] : memref<2512x128xbf16, #tpu.memory_space<vmem>>, vector<1x128xbf16>
    %21 = arith.extf %20 : vector<1x128xbf16> to vector<1x128xf32>
    %22 = vector.broadcast %17 : vector<1x128xf32> to vector<32x128xf32>
    %23 = arith.addf %15, %22 : vector<32x128xf32>
    %cst_15 = arith.constant 0.000000e+00 : f32
    %24 = vector.broadcast %cst_15 : f32 to vector<32x128xf32>
    %25 = arith.maximumf %23, %24 : vector<32x128xf32>
    %cst_16 = arith.constant dense<0.000000e+00> : vector<128xf32>
    %26 = vector.multi_reduction <add>, %25, %cst_16 [0] : vector<32x128xf32> to vector<128xf32>
    %27 = vector.shape_cast %26 : vector<128xf32> to vector<1x128xf32>
    %28 = arith.mulf %25, %25 : vector<32x128xf32>
    %cst_17 = arith.constant dense<0.000000e+00> : vector<128xf32>
    %29 = vector.multi_reduction <add>, %28, %cst_17 [0] : vector<32x128xf32> to vector<128xf32>
    %30 = vector.shape_cast %29 : vector<128xf32> to vector<1x128xf32>
    %31 = tpu.concatenate %27, %30 in 0 : vector<1x128xf32>, vector<1x128xf32> -> vector<2x128xf32>
    %c656 = arith.constant 656 : index
    %c0_18 = arith.constant 0 : index
    %32 = vector.load %arg2[%c656, %c0_18] : memref<2512x128xbf16, #tpu.memory_space<vmem>>, vector<128x128xbf16>
    %33 = arith.extf %32 : vector<128x128xbf16> to vector<128x128xf32>
    %cst_19 = arith.constant dense<0.000000e+00> : vector<2x128xf32>
    %34 = tpu.matmul %31, %33, %cst_19 {dimension_numbers = #tpu.dot_dimension_numbers<[1], [0], [0], [1], [0, 0, 1, 1], [], []>} : vector<2x128xf32>, vector<128x128xf32>, vector<2x128xf32> -> vector<2x128xf32>
    %cst_20 = arith.constant 0.001953125 : f32
    %35 = vector.broadcast %cst_20 : f32 to vector<2x128xf32>
    %36 = arith.mulf %34, %35 : vector<2x128xf32>
    %37 = vector.extract_strided_slice %36 {offsets = [0, 0], sizes = [1, 128], strides = [1, 1]} : vector<2x128xf32> to vector<1x128xf32>
    %38 = vector.extract_strided_slice %36 {offsets = [1, 0], sizes = [1, 128], strides = [1, 1]} : vector<2x128xf32> to vector<1x128xf32>
    %39 = arith.mulf %37, %37 : vector<1x128xf32>
    %40 = arith.subf %38, %39 : vector<1x128xf32>
    %cst_21 = arith.constant 9.99999974E-6 : f32
    %41 = vector.broadcast %cst_21 : f32 to vector<1x128xf32>
    %42 = arith.addf %40, %41 : vector<1x128xf32>
    %43 = math.rsqrt %42 : vector<1x128xf32>
    %44 = arith.mulf %19, %43 : vector<1x128xf32>
    %45 = arith.mulf %37, %44 : vector<1x128xf32>
    %46 = arith.subf %21, %45 : vector<1x128xf32>
    %47 = vector.broadcast %44 : vector<1x128xf32> to vector<32x128xf32>
    %48 = arith.mulf %25, %47 : vector<32x128xf32>
    %49 = vector.broadcast %46 : vector<1x128xf32> to vector<32x128xf32>
    %50 = arith.addf %48, %49 : vector<32x128xf32>
    %cst_22 = arith.constant 0.000000e+00 : f32
    %51 = vector.broadcast %cst_22 : f32 to vector<36x128xf32>
    %c0_23 = arith.constant 0 : index
    %c0_24 = arith.constant 0 : index
    %52 = vector.load %arg4[%c0_23, %c0_24] : memref<36x128xf32, #tpu.memory_space<vmem>>, vector<36x128xf32>
    tpu.vector_store %arg4[%c0_23, %c0_24], %51 {strides = array<i32>} : memref<36x128xf32, #tpu.memory_space<vmem>>, vector<36x128xf32>,
    %53 = vector.extract_strided_slice %50 {offsets = [0, 0], sizes = [16, 128], strides = [1, 1]} : vector<32x128xf32> to vector<16x128xf32>
    %c1_25 = arith.constant 1 : index
    %c0_26 = arith.constant 0 : index
    %54 = vector.load %arg4[%c1_25, %c0_26] : memref<36x128xf32, #tpu.memory_space<vmem>>, vector<16x128xf32>
    tpu.vector_store %arg4[%c1_25, %c0_26], %53 {strides = array<i32>} : memref<36x128xf32, #tpu.memory_space<vmem>>, vector<16x128xf32>,
    %55 = vector.extract_strided_slice %50 {offsets = [16, 0], sizes = [16, 128], strides = [1, 1]} : vector<32x128xf32> to vector<16x128xf32>
    %c19 = arith.constant 19 : index
    %c0_27 = arith.constant 0 : index
    %56 = vector.load %arg4[%c19, %c0_27] : memref<36x128xf32, #tpu.memory_space<vmem>>, vector<16x128xf32>
    tpu.vector_store %arg4[%c19, %c0_27], %55 {strides = array<i32>} : memref<36x128xf32, #tpu.memory_space<vmem>>, vector<16x128xf32>,
    %c0_28 = arith.constant 0 : index
    %c0_29 = arith.constant 0 : index
    %57 = tpu.strided_load %arg4[%c0_28, %c0_29] {strides = array<i32: 2, 1>} : memref<36x128xf32, #tpu.memory_space<vmem>>, vector<8x128xf32>
    %c1_30 = arith.constant 1 : index
    %c0_31 = arith.constant 0 : index
    %58 = tpu.strided_load %arg4[%c1_30, %c0_31] {strides = array<i32: 2, 1>} : memref<36x128xf32, #tpu.memory_space<vmem>>, vector<8x128xf32>
    %c2_32 = arith.constant 2 : index
    %c0_33 = arith.constant 0 : index
    %59 = tpu.strided_load %arg4[%c2_32, %c0_33] {strides = array<i32: 2, 1>} : memref<36x128xf32, #tpu.memory_space<vmem>>, vector<8x128xf32>
    %60 = tpu.concatenate %57, %58, %59 in 1 : vector<8x128xf32>, vector<8x128xf32>, vector<8x128xf32> -> vector<8x384xf32>
    %c18 = arith.constant 18 : index
    %c0_34 = arith.constant 0 : index
    %61 = tpu.strided_load %arg4[%c18, %c0_34] {strides = array<i32: 2, 1>} : memref<36x128xf32, #tpu.memory_space<vmem>>, vector<8x128xf32>
    %c19_35 = arith.constant 19 : index
    %c0_36 = arith.constant 0 : index
    %62 = tpu.strided_load %arg4[%c19_35, %c0_36] {strides = array<i32: 2, 1>} : memref<36x128xf32, #tpu.memory_space<vmem>>, vector<8x128xf32>
    %c20 = arith.constant 20 : index
    %c0_37 = arith.constant 0 : index
    %63 = tpu.strided_load %arg4[%c20, %c0_37] {strides = array<i32: 2, 1>} : memref<36x128xf32, #tpu.memory_space<vmem>>, vector<8x128xf32>
    %64 = tpu.concatenate %61, %62, %63 in 1 : vector<8x128xf32>, vector<8x128xf32>, vector<8x128xf32> -> vector<8x384xf32>
    %65 = tpu.concatenate %60, %64 in 0 : vector<8x384xf32>, vector<8x384xf32> -> vector<16x384xf32>
    %66 = arith.truncf %65 : vector<16x384xf32> to vector<16x384xbf16>
    %c784 = arith.constant 784 : index
    %c0_38 = arith.constant 0 : index
    %67 = vector.load %arg2[%c784, %c0_38] : memref<2512x128xbf16, #tpu.memory_space<vmem>>, vector<384x128xbf16>
    %cst_39 = arith.constant dense<0.000000e+00> : vector<16x128xf32>
    %68 = tpu.matmul %66, %67, %cst_39 {dimension_numbers = #tpu.dot_dimension_numbers<[1], [0], [0], [1], [0, 0, 1, 1], [], []>} : vector<16x384xbf16>, vector<384x128xbf16>, vector<16x128xf32> -> vector<16x128xf32>
    %c1168 = arith.constant 1168 : index
    %c0_40 = arith.constant 0 : index
    %69 = vector.load %arg2[%c1168, %c0_40] : memref<2512x128xbf16, #tpu.memory_space<vmem>>, vector<1x128xbf16>
    %70 = arith.extf %69 : vector<1x128xbf16> to vector<1x128xf32>
    %c1169 = arith.constant 1169 : index
    %c0_41 = arith.constant 0 : index
    %71 = vector.load %arg2[%c1169, %c0_41] : memref<2512x128xbf16, #tpu.memory_space<vmem>>, vector<1x128xbf16>
    %72 = arith.extf %71 : vector<1x128xbf16> to vector<1x128xf32>
    %c1170 = arith.constant 1170 : index
    %c0_42 = arith.constant 0 : index
    %73 = vector.load %arg2[%c1170, %c0_42] : memref<2512x128xbf16, #tpu.memory_space<vmem>>, vector<1x128xbf16>
    %74 = arith.extf %73 : vector<1x128xbf16> to vector<1x128xf32>
    %75 = vector.broadcast %70 : vector<1x128xf32> to vector<16x128xf32>
    %76 = arith.addf %68, %75 : vector<16x128xf32>
    %cst_43 = arith.constant 0.000000e+00 : f32
    %77 = vector.broadcast %cst_43 : f32 to vector<16x128xf32>
    %78 = arith.maximumf %76, %77 : vector<16x128xf32>
    %cst_44 = arith.constant dense<0.000000e+00> : vector<128xf32>
    %79 = vector.multi_reduction <add>, %78, %cst_44 [0] : vector<16x128xf32> to vector<128xf32>
    %80 = vector.shape_cast %79 : vector<128xf32> to vector<1x128xf32>
    %81 = arith.mulf %78, %78 : vector<16x128xf32>
    %cst_45 = arith.constant dense<0.000000e+00> : vector<128xf32>
    %82 = vector.multi_reduction <add>, %81, %cst_45 [0] : vector<16x128xf32> to vector<128xf32>
    %83 = vector.shape_cast %82 : vector<128xf32> to vector<1x128xf32>
    %84 = tpu.concatenate %80, %83 in 0 : vector<1x128xf32>, vector<1x128xf32> -> vector<2x128xf32>
    %c1184 = arith.constant 1184 : index
    %c0_46 = arith.constant 0 : index
    %85 = vector.load %arg2[%c1184, %c0_46] : memref<2512x128xbf16, #tpu.memory_space<vmem>>, vector<128x128xbf16>
    %86 = arith.extf %85 : vector<128x128xbf16> to vector<128x128xf32>
    %cst_47 = arith.constant dense<0.000000e+00> : vector<2x128xf32>
    %87 = tpu.matmul %84, %86, %cst_47 {dimension_numbers = #tpu.dot_dimension_numbers<[1], [0], [0], [1], [0, 0, 1, 1], [], []>} : vector<2x128xf32>, vector<128x128xf32>, vector<2x128xf32> -> vector<2x128xf32>
    %cst_48 = arith.constant 7.812500e-03 : f32
    %88 = vector.broadcast %cst_48 : f32 to vector<2x128xf32>
    %89 = arith.mulf %87, %88 : vector<2x128xf32>
    %90 = vector.extract_strided_slice %89 {offsets = [0, 0], sizes = [1, 128], strides = [1, 1]} : vector<2x128xf32> to vector<1x128xf32>
    %91 = vector.extract_strided_slice %89 {offsets = [1, 0], sizes = [1, 128], strides = [1, 1]} : vector<2x128xf32> to vector<1x128xf32>
    %92 = arith.mulf %90, %90 : vector<1x128xf32>
    %93 = arith.subf %91, %92 : vector<1x128xf32>
    %cst_49 = arith.constant 9.99999974E-6 : f32
    %94 = vector.broadcast %cst_49 : f32 to vector<1x128xf32>
    %95 = arith.addf %93, %94 : vector<1x128xf32>
    %96 = math.rsqrt %95 : vector<1x128xf32>
    %97 = arith.mulf %72, %96 : vector<1x128xf32>
    %98 = arith.mulf %90, %97 : vector<1x128xf32>
    %99 = arith.subf %74, %98 : vector<1x128xf32>
    %100 = vector.broadcast %97 : vector<1x128xf32> to vector<16x128xf32>
    %101 = arith.mulf %78, %100 : vector<16x128xf32>
    %102 = vector.broadcast %99 : vector<1x128xf32> to vector<16x128xf32>
    %103 = arith.addf %101, %102 : vector<16x128xf32>
    %cst_50 = arith.constant 0.000000e+00 : f32
    %104 = vector.broadcast %cst_50 : f32 to vector<20x128xf32>
    %c0_51 = arith.constant 0 : index
    %c0_52 = arith.constant 0 : index
    %105 = vector.load %arg5[%c0_51, %c0_52] : memref<20x128xf32, #tpu.memory_space<vmem>>, vector<20x128xf32>
    tpu.vector_store %arg5[%c0_51, %c0_52], %104 {strides = array<i32>} : memref<20x128xf32, #tpu.memory_space<vmem>>, vector<20x128xf32>,
    %106 = vector.extract_strided_slice %103 {offsets = [0, 0], sizes = [8, 128], strides = [1, 1]} : vector<16x128xf32> to vector<8x128xf32>
    %c1_53 = arith.constant 1 : index
    %c0_54 = arith.constant 0 : index
    %107 = vector.load %arg5[%c1_53, %c0_54] : memref<20x128xf32, #tpu.memory_space<vmem>>, vector<8x128xf32>
    tpu.vector_store %arg5[%c1_53, %c0_54], %106 {strides = array<i32>} : memref<20x128xf32, #tpu.memory_space<vmem>>, vector<8x128xf32>,
    %108 = vector.extract_strided_slice %103 {offsets = [8, 0], sizes = [8, 128], strides = [1, 1]} : vector<16x128xf32> to vector<8x128xf32>
    %c11 = arith.constant 11 : index
    %c0_55 = arith.constant 0 : index
    %109 = vector.load %arg5[%c11, %c0_55] : memref<20x128xf32, #tpu.memory_space<vmem>>, vector<8x128xf32>
    tpu.vector_store %arg5[%c11, %c0_55], %108 {strides = array<i32>} : memref<20x128xf32, #tpu.memory_space<vmem>>, vector<8x128xf32>,
    %c0_56 = arith.constant 0 : index
    %c0_57 = arith.constant 0 : index
    %110 = tpu.strided_load %arg5[%c0_56, %c0_57] {strides = array<i32: 2, 1>} : memref<20x128xf32, #tpu.memory_space<vmem>>, vector<4x128xf32>
    %c1_58 = arith.constant 1 : index
    %c0_59 = arith.constant 0 : index
    %111 = tpu.strided_load %arg5[%c1_58, %c0_59] {strides = array<i32: 2, 1>} : memref<20x128xf32, #tpu.memory_space<vmem>>, vector<4x128xf32>
    %c2_60 = arith.constant 2 : index
    %c0_61 = arith.constant 0 : index
    %112 = tpu.strided_load %arg5[%c2_60, %c0_61] {strides = array<i32: 2, 1>} : memref<20x128xf32, #tpu.memory_space<vmem>>, vector<4x128xf32>
    %113 = tpu.concatenate %110, %111, %112 in 1 : vector<4x128xf32>, vector<4x128xf32>, vector<4x128xf32> -> vector<4x384xf32>
    %c10 = arith.constant 10 : index
    %c0_62 = arith.constant 0 : index
    %114 = tpu.strided_load %arg5[%c10, %c0_62] {strides = array<i32: 2, 1>} : memref<20x128xf32, #tpu.memory_space<vmem>>, vector<4x128xf32>
    %c11_63 = arith.constant 11 : index
    %c0_64 = arith.constant 0 : index
    %115 = tpu.strided_load %arg5[%c11_63, %c0_64] {strides = array<i32: 2, 1>} : memref<20x128xf32, #tpu.memory_space<vmem>>, vector<4x128xf32>
    %c12 = arith.constant 12 : index
    %c0_65 = arith.constant 0 : index
    %116 = tpu.strided_load %arg5[%c12, %c0_65] {strides = array<i32: 2, 1>} : memref<20x128xf32, #tpu.memory_space<vmem>>, vector<4x128xf32>
    %117 = tpu.concatenate %114, %115, %116 in 1 : vector<4x128xf32>, vector<4x128xf32>, vector<4x128xf32> -> vector<4x384xf32>
    %118 = tpu.concatenate %113, %117 in 0 : vector<4x384xf32>, vector<4x384xf32> -> vector<8x384xf32>
    %119 = arith.truncf %118 : vector<8x384xf32> to vector<8x384xbf16>
    %c1312 = arith.constant 1312 : index
    %c0_66 = arith.constant 0 : index
    %120 = vector.load %arg2[%c1312, %c0_66] : memref<2512x128xbf16, #tpu.memory_space<vmem>>, vector<384x128xbf16>
    %cst_67 = arith.constant dense<0.000000e+00> : vector<8x128xf32>
    %121 = tpu.matmul %119, %120, %cst_67 {dimension_numbers = #tpu.dot_dimension_numbers<[1], [0], [0], [1], [0, 0, 1, 1], [], []>} : vector<8x384xbf16>, vector<384x128xbf16>, vector<8x128xf32> -> vector<8x128xf32>
    %c1696 = arith.constant 1696 : index
    %c0_68 = arith.constant 0 : index
    %122 = vector.load %arg2[%c1696, %c0_68] : memref<2512x128xbf16, #tpu.memory_space<vmem>>, vector<1x128xbf16>
    %123 = arith.extf %122 : vector<1x128xbf16> to vector<1x128xf32>
    %c1697 = arith.constant 1697 : index
    %c0_69 = arith.constant 0 : index
    %124 = vector.load %arg2[%c1697, %c0_69] : memref<2512x128xbf16, #tpu.memory_space<vmem>>, vector<1x128xbf16>
    %125 = arith.extf %124 : vector<1x128xbf16> to vector<1x128xf32>
    %c1698 = arith.constant 1698 : index
    %c0_70 = arith.constant 0 : index
    %126 = vector.load %arg2[%c1698, %c0_70] : memref<2512x128xbf16, #tpu.memory_space<vmem>>, vector<1x128xbf16>
    %127 = arith.extf %126 : vector<1x128xbf16> to vector<1x128xf32>
    %128 = vector.broadcast %123 : vector<1x128xf32> to vector<8x128xf32>
    %129 = arith.addf %121, %128 : vector<8x128xf32>
    %cst_71 = arith.constant 0.000000e+00 : f32
    %130 = vector.broadcast %cst_71 : f32 to vector<8x128xf32>
    %131 = arith.maximumf %129, %130 : vector<8x128xf32>
    %cst_72 = arith.constant dense<0.000000e+00> : vector<128xf32>
    %132 = vector.multi_reduction <add>, %131, %cst_72 [0] : vector<8x128xf32> to vector<128xf32>
    %133 = vector.shape_cast %132 : vector<128xf32> to vector<1x128xf32>
    %134 = arith.mulf %131, %131 : vector<8x128xf32>
    %cst_73 = arith.constant dense<0.000000e+00> : vector<128xf32>
    %135 = vector.multi_reduction <add>, %134, %cst_73 [0] : vector<8x128xf32> to vector<128xf32>
    %136 = vector.shape_cast %135 : vector<128xf32> to vector<1x128xf32>
    %137 = tpu.concatenate %133, %136 in 0 : vector<1x128xf32>, vector<1x128xf32> -> vector<2x128xf32>
    %c1712 = arith.constant 1712 : index
    %c0_74 = arith.constant 0 : index
    %138 = vector.load %arg2[%c1712, %c0_74] : memref<2512x128xbf16, #tpu.memory_space<vmem>>, vector<128x128xbf16>
    %139 = arith.extf %138 : vector<128x128xbf16> to vector<128x128xf32>
    %cst_75 = arith.constant dense<0.000000e+00> : vector<2x128xf32>
    %140 = tpu.matmul %137, %139, %cst_75 {dimension_numbers = #tpu.dot_dimension_numbers<[1], [0], [0], [1], [0, 0, 1, 1], [], []>} : vector<2x128xf32>, vector<128x128xf32>, vector<2x128xf32> -> vector<2x128xf32>
    %cst_76 = arith.constant 3.125000e-02 : f32
    %141 = vector.broadcast %cst_76 : f32 to vector<2x128xf32>
    %142 = arith.mulf %140, %141 : vector<2x128xf32>
    %143 = vector.extract_strided_slice %142 {offsets = [0, 0], sizes = [1, 128], strides = [1, 1]} : vector<2x128xf32> to vector<1x128xf32>
    %144 = vector.extract_strided_slice %142 {offsets = [1, 0], sizes = [1, 128], strides = [1, 1]} : vector<2x128xf32> to vector<1x128xf32>
    %145 = arith.mulf %143, %143 : vector<1x128xf32>
    %146 = arith.subf %144, %145 : vector<1x128xf32>
    %cst_77 = arith.constant 9.99999974E-6 : f32
    %147 = vector.broadcast %cst_77 : f32 to vector<1x128xf32>
    %148 = arith.addf %146, %147 : vector<1x128xf32>
    %149 = math.rsqrt %148 : vector<1x128xf32>
    %150 = arith.mulf %125, %149 : vector<1x128xf32>
    %151 = arith.mulf %143, %150 : vector<1x128xf32>
    %152 = arith.subf %127, %151 : vector<1x128xf32>
    %153 = vector.broadcast %150 : vector<1x128xf32> to vector<8x128xf32>
    %154 = arith.mulf %131, %153 : vector<8x128xf32>
    %155 = vector.broadcast %152 : vector<1x128xf32> to vector<8x128xf32>
    %156 = arith.addf %154, %155 : vector<8x128xf32>
    %cst_78 = arith.constant 0.000000e+00 : f32
    %157 = vector.broadcast %cst_78 : f32 to vector<12x128xf32>
    %c0_79 = arith.constant 0 : index
    %c0_80 = arith.constant 0 : index
    %158 = vector.load %arg6[%c0_79, %c0_80] : memref<12x128xf32, #tpu.memory_space<vmem>>, vector<12x128xf32>
    tpu.vector_store %arg6[%c0_79, %c0_80], %157 {strides = array<i32>} : memref<12x128xf32, #tpu.memory_space<vmem>>, vector<12x128xf32>,
    %159 = vector.extract_strided_slice %156 {offsets = [0, 0], sizes = [4, 128], strides = [1, 1]} : vector<8x128xf32> to vector<4x128xf32>
    %c1_81 = arith.constant 1 : index
    %c0_82 = arith.constant 0 : index
    %160 = vector.load %arg6[%c1_81, %c0_82] : memref<12x128xf32, #tpu.memory_space<vmem>>, vector<4x128xf32>
    tpu.vector_store %arg6[%c1_81, %c0_82], %159 {strides = array<i32>} : memref<12x128xf32, #tpu.memory_space<vmem>>, vector<4x128xf32>,
    %161 = vector.extract_strided_slice %156 {offsets = [4, 0], sizes = [4, 128], strides = [1, 1]} : vector<8x128xf32> to vector<4x128xf32>
    %c7 = arith.constant 7 : index
    %c0_83 = arith.constant 0 : index
    %162 = vector.load %arg6[%c7, %c0_83] : memref<12x128xf32, #tpu.memory_space<vmem>>, vector<4x128xf32>
    tpu.vector_store %arg6[%c7, %c0_83], %161 {strides = array<i32>} : memref<12x128xf32, #tpu.memory_space<vmem>>, vector<4x128xf32>,
    %c0_84 = arith.constant 0 : index
    %c0_85 = arith.constant 0 : index
    %163 = tpu.strided_load %arg6[%c0_84, %c0_85] {strides = array<i32: 2, 1>} : memref<12x128xf32, #tpu.memory_space<vmem>>, vector<2x128xf32>
    %c1_86 = arith.constant 1 : index
    %c0_87 = arith.constant 0 : index
    %164 = tpu.strided_load %arg6[%c1_86, %c0_87] {strides = array<i32: 2, 1>} : memref<12x128xf32, #tpu.memory_space<vmem>>, vector<2x128xf32>
    %c2_88 = arith.constant 2 : index
    %c0_89 = arith.constant 0 : index
    %165 = tpu.strided_load %arg6[%c2_88, %c0_89] {strides = array<i32: 2, 1>} : memref<12x128xf32, #tpu.memory_space<vmem>>, vector<2x128xf32>
    %166 = tpu.concatenate %163, %164, %165 in 1 : vector<2x128xf32>, vector<2x128xf32>, vector<2x128xf32> -> vector<2x384xf32>
    %c6 = arith.constant 6 : index
    %c0_90 = arith.constant 0 : index
    %167 = tpu.strided_load %arg6[%c6, %c0_90] {strides = array<i32: 2, 1>} : memref<12x128xf32, #tpu.memory_space<vmem>>, vector<2x128xf32>
    %c7_91 = arith.constant 7 : index
    %c0_92 = arith.constant 0 : index
    %168 = tpu.strided_load %arg6[%c7_91, %c0_92] {strides = array<i32: 2, 1>} : memref<12x128xf32, #tpu.memory_space<vmem>>, vector<2x128xf32>
    %c8 = arith.constant 8 : index
    %c0_93 = arith.constant 0 : index
    %169 = tpu.strided_load %arg6[%c8, %c0_93] {strides = array<i32: 2, 1>} : memref<12x128xf32, #tpu.memory_space<vmem>>, vector<2x128xf32>
    %170 = tpu.concatenate %167, %168, %169 in 1 : vector<2x128xf32>, vector<2x128xf32>, vector<2x128xf32> -> vector<2x384xf32>
    %171 = tpu.concatenate %166, %170 in 0 : vector<2x384xf32>, vector<2x384xf32> -> vector<4x384xf32>
    %172 = arith.truncf %171 : vector<4x384xf32> to vector<4x384xbf16>
    %c1840 = arith.constant 1840 : index
    %c0_94 = arith.constant 0 : index
    %173 = vector.load %arg2[%c1840, %c0_94] : memref<2512x128xbf16, #tpu.memory_space<vmem>>, vector<384x128xbf16>
    %cst_95 = arith.constant dense<0.000000e+00> : vector<4x128xf32>
    %174 = tpu.matmul %172, %173, %cst_95 {dimension_numbers = #tpu.dot_dimension_numbers<[1], [0], [0], [1], [0, 0, 1, 1], [], []>} : vector<4x384xbf16>, vector<384x128xbf16>, vector<4x128xf32> -> vector<4x128xf32>
    %c2224 = arith.constant 2224 : index
    %c0_96 = arith.constant 0 : index
    %175 = vector.load %arg2[%c2224, %c0_96] : memref<2512x128xbf16, #tpu.memory_space<vmem>>, vector<1x128xbf16>
    %176 = arith.extf %175 : vector<1x128xbf16> to vector<1x128xf32>
    %c2225 = arith.constant 2225 : index
    %c0_97 = arith.constant 0 : index
    %177 = vector.load %arg2[%c2225, %c0_97] : memref<2512x128xbf16, #tpu.memory_space<vmem>>, vector<1x128xbf16>
    %178 = arith.extf %177 : vector<1x128xbf16> to vector<1x128xf32>
    %c2226 = arith.constant 2226 : index
    %c0_98 = arith.constant 0 : index
    %179 = vector.load %arg2[%c2226, %c0_98] : memref<2512x128xbf16, #tpu.memory_space<vmem>>, vector<1x128xbf16>
    %180 = arith.extf %179 : vector<1x128xbf16> to vector<1x128xf32>
    %181 = vector.broadcast %176 : vector<1x128xf32> to vector<4x128xf32>
    %182 = arith.addf %174, %181 : vector<4x128xf32>
    %cst_99 = arith.constant 0.000000e+00 : f32
    %183 = vector.broadcast %cst_99 : f32 to vector<4x128xf32>
    %184 = arith.maximumf %182, %183 : vector<4x128xf32>
    %cst_100 = arith.constant dense<0.000000e+00> : vector<128xf32>
    %185 = vector.multi_reduction <add>, %184, %cst_100 [0] : vector<4x128xf32> to vector<128xf32>
    %186 = vector.shape_cast %185 : vector<128xf32> to vector<1x128xf32>
    %187 = arith.mulf %184, %184 : vector<4x128xf32>
    %cst_101 = arith.constant dense<0.000000e+00> : vector<128xf32>
    %188 = vector.multi_reduction <add>, %187, %cst_101 [0] : vector<4x128xf32> to vector<128xf32>
    %189 = vector.shape_cast %188 : vector<128xf32> to vector<1x128xf32>
    %190 = tpu.concatenate %186, %189 in 0 : vector<1x128xf32>, vector<1x128xf32> -> vector<2x128xf32>
    %c2240 = arith.constant 2240 : index
    %c0_102 = arith.constant 0 : index
    %191 = vector.load %arg2[%c2240, %c0_102] : memref<2512x128xbf16, #tpu.memory_space<vmem>>, vector<128x128xbf16>
    %192 = arith.extf %191 : vector<128x128xbf16> to vector<128x128xf32>
    %cst_103 = arith.constant dense<0.000000e+00> : vector<2x128xf32>
    %193 = tpu.matmul %190, %192, %cst_103 {dimension_numbers = #tpu.dot_dimension_numbers<[1], [0], [0], [1], [0, 0, 1, 1], [], []>} : vector<2x128xf32>, vector<128x128xf32>, vector<2x128xf32> -> vector<2x128xf32>
    %cst_104 = arith.constant 1.250000e-01 : f32
    %194 = vector.broadcast %cst_104 : f32 to vector<2x128xf32>
    %195 = arith.mulf %193, %194 : vector<2x128xf32>
    %196 = vector.extract_strided_slice %195 {offsets = [0, 0], sizes = [1, 128], strides = [1, 1]} : vector<2x128xf32> to vector<1x128xf32>
    %197 = vector.extract_strided_slice %195 {offsets = [1, 0], sizes = [1, 128], strides = [1, 1]} : vector<2x128xf32> to vector<1x128xf32>
    %198 = arith.mulf %196, %196 : vector<1x128xf32>
    %199 = arith.subf %197, %198 : vector<1x128xf32>
    %cst_105 = arith.constant 9.99999974E-6 : f32
    %200 = vector.broadcast %cst_105 : f32 to vector<1x128xf32>
    %201 = arith.addf %199, %200 : vector<1x128xf32>
    %202 = math.rsqrt %201 : vector<1x128xf32>
    %203 = arith.mulf %178, %202 : vector<1x128xf32>
    %204 = arith.mulf %196, %203 : vector<1x128xf32>
    %205 = arith.subf %180, %204 : vector<1x128xf32>
    %206 = vector.broadcast %203 : vector<1x128xf32> to vector<4x128xf32>
    %207 = arith.mulf %184, %206 : vector<4x128xf32>
    %208 = vector.broadcast %205 : vector<1x128xf32> to vector<4x128xf32>
    %209 = arith.addf %207, %208 : vector<4x128xf32>
    %210 = vector.extract_strided_slice %209 {offsets = [0, 0], sizes = [1, 128], strides = [1, 1]} : vector<4x128xf32> to vector<1x128xf32>
    %cst_106 = arith.constant 0.000000e+00 : f32
    %211 = vector.broadcast %cst_106 : f32 to vector<1x128xf32>
    %212 = arith.addf %211, %210 : vector<1x128xf32>
    %213 = vector.extract_strided_slice %209 {offsets = [1, 0], sizes = [1, 128], strides = [1, 1]} : vector<4x128xf32> to vector<1x128xf32>
    %214 = arith.addf %212, %213 : vector<1x128xf32>
    %215 = vector.extract_strided_slice %209 {offsets = [2, 0], sizes = [1, 128], strides = [1, 1]} : vector<4x128xf32> to vector<1x128xf32>
    %cst_107 = arith.constant 0.000000e+00 : f32
    %216 = vector.broadcast %cst_107 : f32 to vector<1x128xf32>
    %217 = arith.addf %216, %215 : vector<1x128xf32>
    %218 = vector.extract_strided_slice %209 {offsets = [3, 0], sizes = [1, 128], strides = [1, 1]} : vector<4x128xf32> to vector<1x128xf32>
    %219 = arith.addf %217, %218 : vector<1x128xf32>
    %220 = tpu.concatenate %214, %219 in 0 : vector<1x128xf32>, vector<1x128xf32> -> vector<2x128xf32>
    %c2368 = arith.constant 2368 : index
    %c0_108 = arith.constant 0 : index
    %221 = vector.load %arg2[%c2368, %c0_108] : memref<2512x128xbf16, #tpu.memory_space<vmem>>, vector<128x128xbf16>
    %c2496 = arith.constant 2496 : index
    %c0_109 = arith.constant 0 : index
    %222 = vector.load %arg2[%c2496, %c0_109] : memref<2512x128xbf16, #tpu.memory_space<vmem>>, vector<1x128xbf16>
    %223 = arith.extf %222 : vector<1x128xbf16> to vector<1x128xf32>
    %224 = arith.truncf %220 : vector<2x128xf32> to vector<2x128xbf16>
    %cst_110 = arith.constant dense<0.000000e+00> : vector<2x128xf32>
    %225 = tpu.matmul %224, %221, %cst_110 {dimension_numbers = #tpu.dot_dimension_numbers<[1], [0], [0], [1], [0, 0, 1, 1], [], []>} : vector<2x128xbf16>, vector<128x128xbf16>, vector<2x128xf32> -> vector<2x128xf32>
    %226 = vector.broadcast %223 : vector<1x128xf32> to vector<2x128xf32>
    %227 = arith.addf %225, %226 : vector<2x128xf32>
    %228 = vector.extract_strided_slice %227 {offsets = [0, 0], sizes = [2, 10], strides = [1, 1]} : vector<2x128xf32> to vector<2x10xf32>
    %c0_111 = arith.constant 0 : index
    %c0_112 = arith.constant 0 : index
    %229 = vector.load %arg3[%c0_111, %c0_112] : memref<2x10xf32, #tpu.memory_space<vmem>>, vector<2x10xf32>
    tpu.vector_store %arg3[%c0_111, %c0_112], %228 {strides = array<i32>} : memref<2x10xf32, #tpu.memory_space<vmem>>, vector<2x10xf32>,
    return
  }
  func.func @transform_0(%arg0: i32) -> (i32, i32) {
    %c0_i32 = arith.constant 0 : i32
    %c0_i32_0 = arith.constant 0 : i32
    %c0_i32_1 = arith.constant 0 : i32
    return %c0_i32, %c0_i32_0 : i32, i32
  }
  func.func @transform_1(%arg0: i32) -> (i32, i32) {
    %c0_i32 = arith.constant 0 : i32
    %c0_i32_0 = arith.constant 0 : i32
    %c0_i32_1 = arith.constant 0 : i32
    return %c0_i32, %c0_i32_0 : i32, i32
  }
  func.func @transform_2(%arg0: i32) -> (i32, i32) {
    %c0_i32 = arith.constant 0 : i32
    %c0_i32_0 = arith.constant 0 : i32
    %c0_i32_1 = arith.constant 0 : i32
    return %c0_i32, %c0_i32_0 : i32, i32
  }
}

</mosaic_0001>

<llo_original>
// kernel: audio_classifier_forward.1
$region0: #{audio_classifier_forward.1}
  #allocation0 [shape = 'u32[]', space=smem, size = 0x4, offset = 0x4, fixed_abs, tag = 'smem constant byte address 0x4 - core index']
  #allocation1 [shape = 'u32[144,128]{1,0:T(1,128)}', space=vmem, size = 0x12000, scoped, tag = 'internal scratch']
  #allocation2 [shape = 'f32[36,128]{1,0:T(8,128)}', space=vmem, size = 0x5000, scoped, tag = 'scratch operand']
  #allocation3 [shape = 'f32[20,128]{1,0:T(8,128)}', space=vmem, size = 0x3000, scoped, tag = 'scratch operand']
  #allocation4 [shape = 'f32[12,128]{1,0:T(8,128)}', space=vmem, size = 0x2000, scoped, tag = 'scratch operand']
  %s0 = inlined_call_operand.vmem [shape: f32[72,128], index: 0, kind: input, shape index: {}]
  %s1 = inlined_call_operand.hbm [shape: bf16[2512,128], index: 1, kind: input, shape index: {}]
  %s2 = inlined_call_operand.hbm [shape: f32[2,10], index: 2, kind: output, shape index: {}]
  %s3 = sld [smem:[#allocation0]]
  $region22: #{audio_classifier_forward.1} parent=0
    _
  %s5 = ssub.s32 1, %s3
  %s6 = scalar_select 0, %s5, %s3
  $region1: #{audio_classifier_forward.1} parent=0
    #allocation5 [shape = 'u8[643072]{0}', space=vmem, size = 0x9d000, scoped, tag = 'input window, operand 1, single buffered']
    #allocation6 [shape = 's32[1]{0}', space=sflag, size = 0x4, scoped, tag = 'scoped memory for audio_classifier_forward.1']
    #allocation7 [shape = 's32[1]{0}', space=sflag, size = 0x4, scoped, tag = 'scoped memory for audio_classifier_forward.1']
    #allocation8 [shape = 'u8[1024]{0}', space=vmem, size = 0x400, scoped, tag = 'output window, operand 0, single buffered']
    %7 = vsyncpa [#allocation6], 0
    %8 = vsyncpa [#allocation7], 0
    // Predicated region
    $region2: #{audio_classifier_forward.1} parent=1 // pred_check
      _
    $region3: #{audio_classifier_forward.1} parent=1 // pred_check_branch
      %10 = sbr.rel (0) target = $region5
    $region4: #{audio_classifier_forward.1} parent=1 // pred_region
      _
    $region5: #{audio_classifier_forward.1} parent=1 // pred_fallthru
      _
    // Predicated region
    $region6: #{audio_classifier_forward.1} parent=1 // pred_check
      _
    $region7: #{audio_classifier_forward.1} parent=1 // pred_check_branch
      %12 = sbr.rel (0) target = $region9
    $region8: #{audio_classifier_forward.1} parent=1 // pred_region
      %s14 = ssub.s32 20096, 20096
      %15 = vsyncadd [#allocation6], %s14
      %s16 = sshll.u32 [#allocation5], 4
      %s17 = int_to_ptr.vmem [resolvable:$true] %s16
      %22 = dma.hbm_to_vmem [thread:$0]  %s1, 20096, %s17, [#allocation6], 64, 64, 4
    $region9: #{audio_classifier_forward.1} parent=1 // pred_fallthru
      _
    // Predicated region
    $region10: #{audio_classifier_forward.1} parent=1 // pred_check
      _
    $region11: #{audio_classifier_forward.1} parent=1 // pred_check_branch
      %24 = sbr.rel (0) target = $region13
    $region12: #{audio_classifier_forward.1} parent=1 // pred_region
      %25 = dma.done [#allocation6], 20096
    $region13: #{audio_classifier_forward.1} parent=1 // pred_fallthru
      _
    %v27 = vld [vmem:[%s0] ss:$2 sm:$0xff]
    %s28 = scalar_lea.vmem %s0, 16
    %v29 = vld [vmem:[%s28] ss:$2 sm:$0xff]
    %s30 = scalar_lea.vmem %s0, 1
    %v31 = vld [vmem:[%s30] ss:$2 sm:$0xff]
    %s32 = scalar_lea.vmem %s0, 17
    %v33 = vld [vmem:[%s32] ss:$2 sm:$0xff]
    %s34 = scalar_lea.vmem %s0, 2
    %v35 = vld [vmem:[%s34] ss:$2 sm:$0xff]
    %s36 = scalar_lea.vmem %s0, 18
    %v37 = vld [vmem:[%s36] ss:$2 sm:$0xff]
    %s38 = scalar_lea.vmem %s0, 3
    %v39 = vld [vmem:[%s38] ss:$2 sm:$0xff]
    %s40 = scalar_lea.vmem %s0, 19
    %v41 = vld [vmem:[%s40] ss:$2 sm:$0xff]
    %s42 = scalar_lea.vmem %s0, 4
    %v43 = vld [vmem:[%s42] ss:$2 sm:$0xff]
    %s44 = scalar_lea.vmem %s0, 20
    %v45 = vld [vmem:[%s44] ss:$2 sm:$0xff]
    %s46 = scalar_lea.vmem %s0, 36
    %v47 = vld [vmem:[%s46] ss:$2 sm:$0xff]
    %s48 = scalar_lea.vmem %s0, 52
    %v49 = vld [vmem:[%s48] ss:$2 sm:$0xff]
    %s50 = scalar_lea.vmem %s0, 37
    %v51 = vld [vmem:[%s50] ss:$2 sm:$0xff]
    %s52 = scalar_lea.vmem %s0, 53
    %v53 = vld [vmem:[%s52] ss:$2 sm:$0xff]
    %s54 = scalar_lea.vmem %s0, 38
    %v55 = vld [vmem:[%s54] ss:$2 sm:$0xff]
    %s56 = scalar_lea.vmem %s0, 54
    %v57 = vld [vmem:[%s56] ss:$2 sm:$0xff]
    %s58 = scalar_lea.vmem %s0, 39
    %v59 = vld [vmem:[%s58] ss:$2 sm:$0xff]
    %s60 = scalar_lea.vmem %s0, 55
    %v61 = vld [vmem:[%s60] ss:$2 sm:$0xff]
    %s62 = scalar_lea.vmem %s0, 40
    %v63 = vld [vmem:[%s62] ss:$2 sm:$0xff]
    %s64 = scalar_lea.vmem %s0, 56
    %v65 = vld [vmem:[%s64] ss:$2 sm:$0xff]
    %v66 = vpack.c.bf16 %v29, %v27
    %v67 = vpack.c.bf16 %v33, %v31
    %v68 = vpack.c.bf16 %v37, %v35
    %v69 = vpack.c.bf16 %v41, %v39
    %v70 = vpack.c.bf16 %v45, %v43
    %v71 = vpack.c.bf16 %v49, %v47
    %v72 = vpack.c.bf16 %v53, %v51
    %v73 = vpack.c.bf16 %v57, %v55
    %v74 = vpack.c.bf16 %v61, %v59
    %v75 = vpack.c.bf16 %v65, %v63
    %v76 = vld [vmem:[#allocation5] sm:$0xf]
    %v77 = vld [vmem:[#allocation5 + $0x4] sm:$0xf]
    %v78 = vld [vmem:[#allocation5 + $0x8] sm:$0xf]
    %v79 = vld [vmem:[#allocation5 + $0xc] sm:$0xf]
    %v80 = vld [vmem:[#allocation5 + $0x10] sm:$0xf]
    %v81 = vld [vmem:[#allocation5 + $0x14] sm:$0xf]
    %v82 = vld [vmem:[#allocation5 + $0x18] sm:$0xf]
    %v83 = vld [vmem:[#allocation5 + $0x1c] sm:$0xf]
    %v84 = vld [vmem:[#allocation5 + $0x20] sm:$0xf]
    %v85 = vld [vmem:[#allocation5 + $0x24] sm:$0xf]
    %v86 = vld [vmem:[#allocation5 + $0x28] sm:$0xf]
    %v87 = vld [vmem:[#allocation5 + $0x2c] sm:$0xf]
    %v88 = vld [vmem:[#allocation5 + $0x30] sm:$0xf]
    %v89 = vld [vmem:[#allocation5 + $0x34] sm:$0xf]
    %v90 = vld [vmem:[#allocation5 + $0x38] sm:$0xf]
    %v91 = vld [vmem:[#allocation5 + $0x3c] sm:$0xf]
    %v92 = vld [vmem:[#allocation5 + $0x40] sm:$0xf]
    %v93 = vld [vmem:[#allocation5 + $0x44] sm:$0xf]
    %v94 = vld [vmem:[#allocation5 + $0x48] sm:$0xf]
    %v95 = vld [vmem:[#allocation5 + $0x4c] sm:$0xf]
    %v96 = vld [vmem:[#allocation5 + $0x50] sm:$0xf]
    %v97 = vld [vmem:[#allocation5 + $0x54] sm:$0xf]
    %v98 = vld [vmem:[#allocation5 + $0x58] sm:$0xf]
    %v99 = vld [vmem:[#allocation5 + $0x5c] sm:$0xf]
    %v100 = vld [vmem:[#allocation5 + $0x60] sm:$0xf]
    %v101 = vld [vmem:[#allocation5 + $0x64] sm:$0xf]
    %v102 = vld [vmem:[#allocation5 + $0x68] sm:$0xf]
    %v103 = vld [vmem:[#allocation5 + $0x6c] sm:$0xf]
    %v104 = vld [vmem:[#allocation5 + $0x70] sm:$0xf]
    %v105 = vld [vmem:[#allocation5 + $0x74] sm:$0xf]
    %v106 = vld [vmem:[#allocation5 + $0x78] sm:$0xf]
    %v107 = vld [vmem:[#allocation5 + $0x7c] sm:$0xf]
    %v108 = vld [vmem:[#allocation5 + $0x80] sm:$0xf]
    %v109 = vld [vmem:[#allocation5 + $0x84] sm:$0xf]
    %v110 = vld [vmem:[#allocation5 + $0x88] sm:$0xf]
    %v111 = vld [vmem:[#allocation5 + $0x8c] sm:$0xf]
    %v112 = vld [vmem:[#allocation5 + $0x90] sm:$0xf]
    %v113 = vld [vmem:[#allocation5 + $0x94] sm:$0xf]
    %v114 = vld [vmem:[#allocation5 + $0x98] sm:$0xf]
    %v115 = vld [vmem:[#allocation5 + $0x9c] sm:$0xf]
    %v116 = vld [vmem:[#allocation5 + $0xa0] sm:$0xf]
    %v117 = vld [vmem:[#allocation5 + $0xa4] sm:$0xf]
    %v118 = vld [vmem:[#allocation5 + $0xa8] sm:$0xf]
    %v119 = vld [vmem:[#allocation5 + $0xac] sm:$0xf]
    %v120 = vld [vmem:[#allocation5 + $0xb0] sm:$0xf]
    %v121 = vld [vmem:[#allocation5 + $0xb4] sm:$0xf]
    %v122 = vld [vmem:[#allocation5 + $0xb8] sm:$0xf]
    %v123 = vld [vmem:[#allocation5 + $0xbc] sm:$0xf]
    %v124 = vld [vmem:[#allocation5 + $0xc0] sm:$0xf]
    %v125 = vld [vmem:[#allocation5 + $0xc4] sm:$0xf]
    %v126 = vld [vmem:[#allocation5 + $0xc8] sm:$0xf]
    %v127 = vld [vmem:[#allocation5 + $0xcc] sm:$0xf]
    %v128 = vld [vmem:[#allocation5 + $0xd0] sm:$0xf]
    %v129 = vld [vmem:[#allocation5 + $0xd4] sm:$0xf]
    %v130 = vld [vmem:[#allocation5 + $0xd8] sm:$0xf]
    %v131 = vld [vmem:[#allocation5 + $0xdc] sm:$0xf]
    %v132 = vld [vmem:[#allocation5 + $0xe0] sm:$0xf]
    %v133 = vld [vmem:[#allocation5 + $0xe4] sm:$0xf]
    %v134 = vld [vmem:[#allocation5 + $0xe8] sm:$0xf]
    %v135 = vld [vmem:[#allocation5 + $0xec] sm:$0xf]
    %v136 = vld [vmem:[#allocation5 + $0xf0] sm:$0xf]
    %v137 = vld [vmem:[#allocation5 + $0xf4] sm:$0xf]
    %v138 = vld [vmem:[#allocation5 + $0xf8] sm:$0xf]
    %v139 = vld [vmem:[#allocation5 + $0xfc] sm:$0xf]
    %v140 = vld [vmem:[#allocation5 + $0x100] sm:$0xf]
    %v141 = vld [vmem:[#allocation5 + $0x104] sm:$0xf]
    %v142 = vld [vmem:[#allocation5 + $0x108] sm:$0xf]
    %v143 = vld [vmem:[#allocation5 + $0x10c] sm:$0xf]
    %v144 = vld [vmem:[#allocation5 + $0x110] sm:$0xf]
    %v145 = vld [vmem:[#allocation5 + $0x114] sm:$0xf]
    %v146 = vld [vmem:[#allocation5 + $0x118] sm:$0xf]
    %v147 = vld [vmem:[#allocation5 + $0x11c] sm:$0xf]
    %v148 = vld [vmem:[#allocation5 + $0x120] sm:$0xf]
    %v149 = vld [vmem:[#allocation5 + $0x124] sm:$0xf]
    %v150 = vld [vmem:[#allocation5 + $0x128] sm:$0xf]
    %v151 = vld [vmem:[#allocation5 + $0x12c] sm:$0xf]
    %v152 = vld [vmem:[#allocation5 + $0x130] sm:$0xf]
    %v153 = vld [vmem:[#allocation5 + $0x134] sm:$0xf]
    %v154 = vld [vmem:[#allocation5 + $0x138] sm:$0xf]
    %v155 = vld [vmem:[#allocation5 + $0x13c] sm:$0xf]
    %v156 = vld [vmem:[#allocation5 + $0x140] sm:$0x1]
    %v157 = vunpack.c.l.bf16 %v156
    %v158 = vld [vmem:[#allocation5 + $0x140] sm:$0x2]
    %v159 = vunpack.c.l.bf16 %v158
    %v160 = vlaneseq
    %v161 = vshrl.u32 %v160, 7
    %v162 = vsub.s32 0, %v161
    %v163 = vrot.slane %v157, %v162
    %v244 = vunpack.c.l.b16 %v76
    %v245 = vunpack.c.l.b16 %v77
    %v246 = vunpack.c.l.b16 %v78
    %v247 = vunpack.c.l.b16 %v79
    %v248 = vunpack.c.l.b16 %v80
    %v249 = vunpack.c.l.b16 %v81
    %v250 = vunpack.c.l.b16 %v82
    %v251 = vunpack.c.l.b16 %v83
    %v252 = vunpack.c.l.b16 %v84
    %v253 = vunpack.c.l.b16 %v85
    %v254 = vunpack.c.l.b16 %v86
    %v255 = vunpack.c.l.b16 %v87
    %v256 = vunpack.c.l.b16 %v88
    %v257 = vunpack.c.l.b16 %v89
    %v258 = vunpack.c.l.b16 %v90
    %v259 = vunpack.c.l.b16 %v91
    %v260 = vunpack.c.l.b16 %v92
    %v261 = vunpack.c.l.b16 %v93
    %v262 = vunpack.c.l.b16 %v94
    %v263 = vunpack.c.l.b16 %v95
    %v264 = vunpack.c.l.b16 %v96
    %v265 = vunpack.c.l.b16 %v97
    %v266 = vunpack.c.l.b16 %v98
    %v267 = vunpack.c.l.b16 %v99
    %v268 = vunpack.c.l.b16 %v100
    %v269 = vunpack.c.l.b16 %v101
    %v270 = vunpack.c.l.b16 %v102
    %v271 = vunpack.c.l.b16 %v103
    %v272 = vunpack.c.l.b16 %v104
    %v273 = vunpack.c.l.b16 %v105
    %v274 = vunpack.c.l.b16 %v106
    %v275 = vunpack.c.l.b16 %v107
    %v276 = vunpack.c.l.b16 %v108
    %v277 = vunpack.c.l.b16 %v109
    %v278 = vunpack.c.l.b16 %v110
    %v279 = vunpack.c.l.b16 %v111
    %v280 = vunpack.c.l.b16 %v112
    %v281 = vunpack.c.l.b16 %v113
    %v282 = vunpack.c.l.b16 %v114
    %v283 = vunpack.c.l.b16 %v115
    %v284 = vunpack.c.l.b16 %v116
    %v285 = vunpack.c.l.b16 %v117
    %v286 = vunpack.c.l.b16 %v118
    %v287 = vunpack.c.l.b16 %v119
    %v288 = vunpack.c.l.b16 %v120
    %v289 = vunpack.c.l.b16 %v121
    %v290 = vunpack.c.l.b16 %v122
    %v291 = vunpack.c.l.b16 %v123
    %v292 = vunpack.c.l.b16 %v124
    %v293 = vunpack.c.l.b16 %v125
    %v294 = vunpack.c.l.b16 %v126
    %v295 = vunpack.c.l.b16 %v127
    %v296 = vunpack.c.l.b16 %v128
    %v297 = vunpack.c.l.b16 %v129
    %v298 = vunpack.c.l.b16 %v130
    %v299 = vunpack.c.l.b16 %v131
    %v300 = vunpack.c.l.b16 %v132
    %v301 = vunpack.c.l.b16 %v133
    %v302 = vunpack.c.l.b16 %v134
    %v303 = vunpack.c.l.b16 %v135
    %v304 = vunpack.c.l.b16 %v136
    %v305 = vunpack.c.l.b16 %v137
    %v306 = vunpack.c.l.b16 %v138
    %v307 = vunpack.c.l.b16 %v139
    %v308 = vunpack.c.l.b16 %v140
    %v309 = vunpack.c.l.b16 %v141
    %v310 = vunpack.c.l.b16 %v142
    %v311 = vunpack.c.l.b16 %v143
    %v312 = vunpack.c.l.b16 %v144
    %v313 = vunpack.c.l.b16 %v145
    %v314 = vunpack.c.l.b16 %v146
    %v315 = vunpack.c.l.b16 %v147
    %v316 = vunpack.c.l.b16 %v148
    %v317 = vunpack.c.l.b16 %v149
    %v318 = vunpack.c.l.b16 %v150
    %v319 = vunpack.c.l.b16 %v151
    %v320 = vunpack.c.l.b16 %v152
    %v321 = vunpack.c.l.b16 %v153
    %v322 = vunpack.c.l.b16 %v154
    %v323 = vunpack.c.l.b16 %v155
    %v324 = vpack.c.b16 %v245, %v244
    %v325 = vpack.c.b16 %v247, %v246
    %v326 = vpack.c.b16 %v249, %v248
    %v327 = vpack.c.b16 %v251, %v250
    %v328 = vpack.c.b16 %v253, %v252
    %v329 = vpack.c.b16 %v255, %v254
    %v330 = vpack.c.b16 %v257, %v256
    %v331 = vpack.c.b16 %v259, %v258
    %v332 = vpack.c.b16 %v261, %v260
    %v333 = vpack.c.b16 %v263, %v262
    %v334 = vpack.c.b16 %v265, %v264
    %v335 = vpack.c.b16 %v267, %v266
    %v336 = vpack.c.b16 %v269, %v268
    %v337 = vpack.c.b16 %v271, %v270
    %v338 = vpack.c.b16 %v273, %v272
    %v339 = vpack.c.b16 %v275, %v274
    %v340 = vpack.c.b16 %v277, %v276
    %v341 = vpack.c.b16 %v279, %v278
    %v342 = vpack.c.b16 %v281, %v280
    %v343 = vpack.c.b16 %v283, %v282
    %v344 = vpack.c.b16 %v285, %v284
    %v345 = vpack.c.b16 %v287, %v286
    %v346 = vpack.c.b16 %v289, %v288
    %v347 = vpack.c.b16 %v291, %v290
    %v348 = vpack.c.b16 %v293, %v292
    %v349 = vpack.c.b16 %v295, %v294
    %v350 = vpack.c.b16 %v297, %v296
    %v351 = vpack.c.b16 %v299, %v298
    %v352 = vpack.c.b16 %v301, %v300
    %v353 = vpack.c.b16 %v303, %v302
    %v354 = vpack.c.b16 %v305, %v304
    %v355 = vpack.c.b16 %v307, %v306
    %v356 = vpack.c.b16 %v309, %v308
    %v357 = vpack.c.b16 %v311, %v310
    %v358 = vpack.c.b16 %v313, %v312
    %v359 = vpack.c.b16 %v315, %v314
    %v360 = vpack.c.b16 %v317, %v316
    %v361 = vpack.c.b16 %v319, %v318
    %v362 = vpack.c.b16 %v321, %v320
    %v363 = vpack.c.b16 %v323, %v322
    %404 = vmatprep.subr.bf16.mxu0 0
    %405 = vmatpush1.bf16.msra.mxu0 %v331
    %406 = vmatprep.subr.bf16.mxu0 0
    %407 = vmatpush1.bf16.msra.mxu0 %v330
    %408 = vmatprep.subr.bf16.mxu0 0
    %409 = vmatpush1.bf16.msra.mxu0 %v329
    %410 = vmatprep.subr.bf16.mxu0 0
    %411 = vmatpush1.bf16.msra.mxu0 %v328
    %412 = vmatprep.subr.bf16.mxu0 0
    %413 = vmatpush1.bf16.msra.mxu0 %v327
    %414 = vmatprep.subr.bf16.mxu0 0
    %415 = vmatpush1.bf16.msra.mxu0 %v326
    %416 = vmatprep.subr.bf16.mxu0 0
    %417 = vmatpush1.bf16.msra.mxu0 %v325
    %418 = vmatprep.subr.bf16.mxu0 0
    %419 = vmatpush1.bf16.msra.mxu0 %v324
    %420 = vmatprep.subr.bf16.mxu0 0
    %421 = vmatpush2.bf16.msra.mxu0 %v339
    %422 = vmatprep.subr.bf16.mxu0 0
    %423 = vmatpush2.bf16.msra.mxu0 %v338
    %424 = vmatprep.subr.bf16.mxu0 0
    %425 = vmatpush2.bf16.msra.mxu0 %v337
    %426 = vmatprep.subr.bf16.mxu0 0
    %427 = vmatpush2.bf16.msra.mxu0 %v336
    %428 = vmatprep.subr.bf16.mxu0 0
    %429 = vmatpush2.bf16.msra.mxu0 %v335
    %430 = vmatprep.subr.bf16.mxu0 0
    %431 = vmatpush2.bf16.msra.mxu0 %v334
    %432 = vmatprep.subr.bf16.mxu0 0
    %433 = vmatpush2.bf16.msra.mxu0 %v333
    %434 = vmatprep.subr.bf16.mxu0 0
    %435 = vmatpush2.bf16.msra.mxu0 %v332
    %436 = vmatprep.mubr.bf16.mxu0 %v67
    %437 = vmatmul.mubr.bf16.gmra.mxu0 %v66
    %v438 = vpop.f32.mrf.mxu0
    %v439 = vadd.f32 %v163, %v438
    %v440 = vpop.f32.mrf.mxu0
    %v441 = vpop.f32.mrf.mxu0
    %v442 = vadd.f32 %v163, %v441
    %v443 = vpop.f32.mrf.mxu0
    %444 = vmatprep.mubr.bf16.mxu0 %v72
    %445 = vmatmul.mubr.bf16.gmra.mxu0 %v71
    %v446 = vpop.f32.mrf.mxu0
    %v447 = vadd.f32 %v163, %v446
    %v448 = vpop.f32.mrf.mxu0
    %v449 = vpop.f32.mrf.mxu0
    %v450 = vadd.f32 %v163, %v449
    %v451 = vpop.f32.mrf.mxu0
    %452 = vdwg.mxu0
    %453 = vmatprep.subr.bf16.mxu0 0
    %454 = vmatpush1.bf16.msra.mxu0 %v347
    %455 = vmatprep.subr.bf16.mxu0 0
    %456 = vmatpush1.bf16.msra.mxu0 %v346
    %457 = vmatprep.subr.bf16.mxu0 0
    %458 = vmatpush1.bf16.msra.mxu0 %v345
    %459 = vmatprep.subr.bf16.mxu0 0
    %460 = vmatpush1.bf16.msra.mxu0 %v344
    %461 = vmatprep.subr.bf16.mxu0 0
    %462 = vmatpush1.bf16.msra.mxu0 %v343
    %463 = vmatprep.subr.bf16.mxu0 0
    %464 = vmatpush1.bf16.msra.mxu0 %v342
    %465 = vmatprep.subr.bf16.mxu0 0
    %466 = vmatpush1.bf16.msra.mxu0 %v341
    %467 = vmatprep.subr.bf16.mxu0 0
    %468 = vmatpush1.bf16.msra.mxu0 %v340
    %469 = vmatprep.subr.bf16.mxu0 0
    %470 = vmatpush2.bf16.msra.mxu0 %v355
    %471 = vmatprep.subr.bf16.mxu0 0
    %472 = vmatpush2.bf16.msra.mxu0 %v354
    %473 = vmatprep.subr.bf16.mxu0 0
    %474 = vmatpush2.bf16.msra.mxu0 %v353
    %475 = vmatprep.subr.bf16.mxu0 0
    %476 = vmatpush2.bf16.msra.mxu0 %v352
    %477 = vmatprep.subr.bf16.mxu0 0
    %478 = vmatpush2.bf16.msra.mxu0 %v351
    %479 = vmatprep.subr.bf16.mxu0 0
    %480 = vmatpush2.bf16.msra.mxu0 %v350
    %481 = vmatprep.subr.bf16.mxu0 0
    %482 = vmatpush2.bf16.msra.mxu0 %v349
    %483 = vmatprep.subr.bf16.mxu0 0
    %484 = vmatpush2.bf16.msra.mxu0 %v348
    %485 = vmatprep.mubr.bf16.mxu0 %v69
    %486 = vmatmul.mubr.bf16.gmra.mxu0 %v68
    %v487 = vpop.f32.mrf.mxu0
    %v488 = vadd.f32 %v439, %v487
    %v489 = vpop.f32.mrf.mxu0
    %v490 = vpop.f32.mrf.mxu0
    %v491 = vadd.f32 %v442, %v490
    %v492 = vpop.f32.mrf.mxu0
    %493 = vmatprep.mubr.bf16.mxu0 %v74
    %494 = vmatmul.mubr.bf16.gmra.mxu0 %v73
    %v495 = vpop.f32.mrf.mxu0
    %v496 = vadd.f32 %v447, %v495
    %v497 = vpop.f32.mrf.mxu0
    %v498 = vpop.f32.mrf.mxu0
    %v499 = vadd.f32 %v450, %v498
    %v500 = vpop.f32.mrf.mxu0
    %501 = vdwg.mxu0
    %502 = vmatprep.subr.bf16.mxu0 0
    %503 = vmatpush1.bf16.msra.mxu0 %v363
    %504 = vmatprep.subr.bf16.mxu0 0
    %505 = vmatpush1.bf16.msra.mxu0 %v362
    %506 = vmatprep.subr.bf16.mxu0 0
    %507 = vmatpush1.bf16.msra.mxu0 %v361
    %508 = vmatprep.subr.bf16.mxu0 0
    %509 = vmatpush1.bf16.msra.mxu0 %v360
    %510 = vmatprep.subr.bf16.mxu0 0
    %511 = vmatpush1.bf16.msra.mxu0 %v359
    %512 = vmatprep.subr.bf16.mxu0 0
    %513 = vmatpush1.bf16.msra.mxu0 %v358
    %514 = vmatprep.subr.bf16.mxu0 0
    %515 = vmatpush1.bf16.msra.mxu0 %v357
    %516 = vmatprep.subr.bf16.mxu0 0
    %517 = vmatpush1.bf16.msra.mxu0 %v356
    %518 = vmatprep.subr.bf16.mxu0 0
    %519 = vmatpush2.bf16.msra.mxu0 0
    %520 = vmatprep.subr.bf16.mxu0 0
    %521 = vmatpush2.bf16.msra.mxu0 0
    %522 = vmatprep.subr.bf16.mxu0 0
    %523 = vmatpush2.bf16.msra.mxu0 0
    %524 = vmatprep.subr.bf16.mxu0 0
    %525 = vmatpush2.bf16.msra.mxu0 0
    %526 = vmatprep.subr.bf16.mxu0 0
    %527 = vmatpush2.bf16.msra.mxu0 0
    %528 = vmatprep.subr.bf16.mxu0 0
    %529 = vmatpush2.bf16.msra.mxu0 0
    %530 = vmatprep.subr.bf16.mxu0 0
    %531 = vmatpush2.bf16.msra.mxu0 0
    %532 = vmatprep.subr.bf16.mxu0 0
    %533 = vmatpush2.bf16.msra.mxu0 0
    %534 = vmatprep.mubr.bf16.mxu0 0
    %535 = vmatmul.mubr.bf16.gmra.mxu0 %v70
    %v536 = vpop.f32.mrf.mxu0
    %v537 = vadd.f32 %v488, %v536
    %v538 = vpop.f32.mrf.mxu0
    %v539 = vpop.f32.mrf.mxu0
    %v540 = vadd.f32 %v491, %v539
    %v541 = vpop.f32.mrf.mxu0
    %542 = vmatprep.mubr.bf16.mxu0 0
    %543 = vmatmul.mubr.bf16.gmra.mxu0 %v75
    %v544 = vpop.f32.mrf.mxu0
    %v545 = vadd.f32 %v496, %v544
    %v546 = vpop.f32.mrf.mxu0
    %v547 = vpop.f32.mrf.mxu0
    %v548 = vadd.f32 %v499, %v547
    %v549 = vpop.f32.mrf.mxu0
    %550 = vdwg.mxu0
    %v551 = vmax.f32 %v537, 0.0
    %v552 = vmax.f32 %v540, 0.0
    %v553 = vmax.f32 %v545, 0.0
    %v554 = vmax.f32 %v548, 0.0
    %v555 = vadd.f32 %v551, %v552
    %v556 = vadd.f32 %v555, %v553
    %v557 = vadd.f32 %v556, %v554
    %v558 = vrot.slane %v557, 4
    %v559 = vadd.f32 %v557, %v558
    %v560 = vrot.slane %v559, 2
    %v561 = vadd.f32 %v559, %v560
    %v562 = vrot.slane %v561, 1
    %v563 = vadd.f32 %v561, %v562
    %v564 = vmul.f32 %v551, %v551
    %v565 = vmul.f32 %v552, %v552
    %v566 = vmul.f32 %v553, %v553
    %v567 = vmul.f32 %v554, %v554
    %v568 = vadd.f32 %v564, %v565
    %v569 = vadd.f32 %v568, %v566
    %v570 = vadd.f32 %v569, %v567
    %v571 = vrot.slane %v570, 4
    %v572 = vadd.f32 %v570, %v571
    %v573 = vrot.slane %v572, 2
    %v574 = vadd.f32 %v572, %v573
    %v575 = vrot.slane %v574, 1
    %v576 = vadd.f32 %v574, %v575
    %vm577 = vcmask 1040384
    %v578 = vsel %vm577, %v563, %v576
    %v579 = vld [vmem:[#allocation5 + $0x148] sm:$0xf]
    %v580 = vld [vmem:[#allocation5 + $0x14c] sm:$0xf]
    %v581 = vld [vmem:[#allocation5 + $0x150] sm:$0xf]
    %v582 = vld [vmem:[#allocation5 + $0x154] sm:$0xf]
    %v583 = vld [vmem:[#allocation5 + $0x158] sm:$0xf]
    %v584 = vld [vmem:[#allocation5 + $0x15c] sm:$0xf]
    %v585 = vld [vmem:[#allocation5 + $0x160] sm:$0xf]
    %v586 = vld [vmem:[#allocation5 + $0x164] sm:$0xf]
    %v587 = vld [vmem:[#allocation5 + $0x168] sm:$0xf]
    %v588 = vld [vmem:[#allocation5 + $0x16c] sm:$0xf]
    %v589 = vld [vmem:[#allocation5 + $0x170] sm:$0xf]
    %v590 = vld [vmem:[#allocation5 + $0x174] sm:$0xf]
    %v591 = vld [vmem:[#allocation5 + $0x178] sm:$0xf]
    %v592 = vld [vmem:[#allocation5 + $0x17c] sm:$0xf]
    %v593 = vld [vmem:[#allocation5 + $0x180] sm:$0xf]
    %v594 = vld [vmem:[#allocation5 + $0x184] sm:$0xf]
    %v595 = vunpack.c.l.bf16 %v579
    %v596 = vunpack.c.l.bf16 %v580
    %v597 = vunpack.c.l.bf16 %v581
    %v598 = vunpack.c.l.bf16 %v582
    %v599 = vunpack.c.l.bf16 %v583
    %v600 = vunpack.c.l.bf16 %v584
    %v601 = vunpack.c.l.bf16 %v585
    %v602 = vunpack.c.l.bf16 %v586
    %v603 = vunpack.c.l.bf16 %v587
    %v604 = vunpack.c.l.bf16 %v588
    %v605 = vunpack.c.l.bf16 %v589
    %v606 = vunpack.c.l.bf16 %v590
    %v607 = vunpack.c.l.bf16 %v591
    %v608 = vunpack.c.l.bf16 %v592
    %v609 = vunpack.c.l.bf16 %v593
    %v610 = vunpack.c.l.bf16 %v594
    %611 = vmatprep.subr.mxu0 0.0
    %612 = vmatpush1.msra.mxu0 %v610
    %613 = vmatprep.subr.mxu0 0.0
    %614 = vmatpush1.msra.mxu0 %v609
    %615 = vmatprep.subr.mxu0 0.0
    %616 = vmatpush1.msra.mxu0 %v608
    %617 = vmatprep.subr.mxu0 0.0
    %618 = vmatpush1.msra.mxu0 %v607
    %619 = vmatprep.subr.mxu0 0.0
    %620 = vmatpush1.msra.mxu0 %v606
    %621 = vmatprep.subr.mxu0 0.0
    %622 = vmatpush1.msra.mxu0 %v605
    %623 = vmatprep.subr.mxu0 0.0
    %624 = vmatpush1.msra.mxu0 %v604
    %625 = vmatprep.subr.mxu0 0.0
    %626 = vmatpush1.msra.mxu0 %v603
    %627 = vmatprep.subr.mxu0 0.0
    %628 = vmatpush1.msra.mxu0 %v602
    %629 = vmatprep.subr.mxu0 0.0
    %630 = vmatpush1.msra.mxu0 %v601
    %631 = vmatprep.subr.mxu0 0.0
    %632 = vmatpush1.msra.mxu0 %v600
    %633 = vmatprep.subr.mxu0 0.0
    %634 = vmatpush1.msra.mxu0 %v599
    %635 = vmatprep.subr.mxu0 0.0
    %636 = vmatpush1.msra.mxu0 %v598
    %637 = vmatprep.subr.mxu0 0.0
    %638 = vmatpush1.msra.mxu0 %v597
    %639 = vmatprep.subr.mxu0 0.0
    %640 = vmatpush1.msra.mxu0 %v596
    %641 = vmatprep.subr.mxu0 0.0
    %642 = vmatpush1.msra.mxu0 %v595
    %643 = vmatprep.subr.mxu0 0.0
    %644 = vmatpush2.msra.mxu0 0.0
    %645 = vmatprep.subr.mxu0 0.0
    %646 = vmatpush2.msra.mxu0 0.0
    %647 = vmatprep.subr.mxu0 0.0
    %648 = vmatpush2.msra.mxu0 0.0
    %649 = vmatprep.subr.mxu0 0.0
    %650 = vmatpush2.msra.mxu0 0.0
    %651 = vmatprep.subr.mxu0 0.0
    %652 = vmatpush2.msra.mxu0 0.0
    %653 = vmatprep.subr.mxu0 0.0
    %654 = vmatpush2.msra.mxu0 0.0
    %655 = vmatprep.subr.mxu0 0.0
    %656 = vmatpush2.msra.mxu0 0.0
    %657 = vmatprep.subr.mxu0 0.0
    %658 = vmatpush2.msra.mxu0 0.0
    %659 = vmatprep.subr.mxu0 0.0
    %660 = vmatpush2.msra.mxu0 0.0
    %661 = vmatprep.subr.mxu0 0.0
    %662 = vmatpush2.msra.mxu0 0.0
    %663 = vmatprep.subr.mxu0 0.0
    %664 = vmatpush2.msra.mxu0 0.0
    %665 = vmatprep.subr.mxu0 0.0
    %666 = vmatpush2.msra.mxu0 0.0
    %667 = vmatprep.subr.mxu0 0.0
    %668 = vmatpush2.msra.mxu0 0.0
    %669 = vmatprep.subr.mxu0 0.0
    %670 = vmatpush2.msra.mxu0 0.0
    %671 = vmatprep.subr.mxu0 0.0
    %672 = vmatpush2.msra.mxu0 0.0
    %673 = vmatprep.subr.mxu0 0.0
    %674 = vmatpush2.msra.mxu0 0.0
    %675 = vmatprep.mubr.f32.mxu0 0.0
    %676 = vmatmul.mubr.f32.gmra.mxu0 %v578
    %v677 = vpop.f32.mrf.mxu0
    %v678 = vadd.f32 0.0, %v677
    %v679 = vpop.f32.mrf.mxu0
    %680 = vdwg.mxu0
    %v681 = vmul.f32 %v678, 0.001953125
    %v682 = vmul.f32 %v681, %v681
    %v684 = vrot.slane %v682, 7
    %v686 = vsub.f32 %v681, %v684
    %v687 = vadd.f32 %v686, 1e-05
    %v688 = vrsqrt.pop %v687
    %v689 = vmul.f32 %v157, %v688
    %v691 = vrot.slane %v689, 1
    %v693 = vmul.f32 %v681, %v691
    %v695 = vrot.slane %v693, 6
    %v697 = vsub.f32 %v159, %v695
    %v698 = vlaneseq
    %v699 = vshrl.u32 %v698, 7
    %v700 = vsub.s32 1, %v699
    %v701 = vrot.slane %v689, %v700
    %v702 = vmul.f32 %v551, %v701
    %v703 = vmul.f32 %v552, %v701
    %v704 = vmul.f32 %v553, %v701
    %v705 = vmul.f32 %v554, %v701
    %v706 = vlaneseq
    %v707 = vshrl.u32 %v706, 7
    %v708 = vsub.s32 2, %v707
    %v709 = vrot.slane %v697, %v708
    %v710 = vadd.f32 %v702, %v709
    %v711 = vadd.f32 %v703, %v709
    %v712 = vadd.f32 %v704, %v709
    %v713 = vadd.f32 %v705, %v709
    %714 = vst [vmem:[#allocation2] sm:$0xff] 0.0
    %715 = vst [vmem:[#allocation2 + $0x8] sm:$0xff] 0.0
    %716 = vst [vmem:[#allocation2 + $0x10] sm:$0xff] 0.0
    %717 = vst [vmem:[#allocation2 + $0x18] sm:$0xff] 0.0
    %718 = vst [vmem:[#allocation2 + $0x20] sm:$0xf] 0.0
    %719 = vst [vmem:[#allocation2 + $0x1] sm:$0xff] %v710
    %720 = vst [vmem:[#allocation2 + $0x9] sm:$0xff] %v711
    %721 = vst [vmem:[#allocation2 + $0x13] sm:$0xff] %v712
    %722 = vst [vmem:[#allocation2 + $0x1b] sm:$0xff] %v713
    %v723 = vld [vmem:[#allocation2] ss:$2 sm:$0xff]
    %s724 = scalar_lea.vmem [#allocation2], 1
    %v725 = vld [vmem:[%s724] ss:$2 sm:$0xff]
    %s726 = scalar_lea.vmem [#allocation2], 2
    %v727 = vld [vmem:[%s726] ss:$2 sm:$0xff]
    %s728 = scalar_lea.vmem [#allocation2], 18
    %v729 = vld [vmem:[%s728] ss:$2 sm:$0xff]
    %s730 = scalar_lea.vmem [#allocation2], 19
    %v731 = vld [vmem:[%s730] ss:$2 sm:$0xff]
    %s732 = scalar_lea.vmem [#allocation2], 20
    %v733 = vld [vmem:[%s732] ss:$2 sm:$0xff]
    %v734 = vpack.c.bf16 %v729, %v723
    %v735 = vpack.c.bf16 %v731, %v725
    %v736 = vpack.c.bf16 %v733, %v727
    %v737 = vld [vmem:[#allocation5 + $0x188] sm:$0xf]
    %v738 = vld [vmem:[#allocation5 + $0x18c] sm:$0xf]
    %v739 = vld [vmem:[#allocation5 + $0x190] sm:$0xf]
    %v740 = vld [vmem:[#allocation5 + $0x194] sm:$0xf]
    %v741 = vld [vmem:[#allocation5 + $0x198] sm:$0xf]
    %v742 = vld [vmem:[#allocation5 + $0x19c] sm:$0xf]
    %v743 = vld [vmem:[#allocation5 + $0x1a0] sm:$0xf]
    %v744 = vld [vmem:[#allocation5 + $0x1a4] sm:$0xf]
    %v745 = vld [vmem:[#allocation5 + $0x1a8] sm:$0xf]
    %v746 = vld [vmem:[#allocation5 + $0x1ac] sm:$0xf]
    %v747 = vld [vmem:[#allocation5 + $0x1b0] sm:$0xf]
    %v748 = vld [vmem:[#allocation5 + $0x1b4] sm:$0xf]
    %v749 = vld [vmem:[#allocation5 + $0x1b8] sm:$0xf]
    %v750 = vld [vmem:[#allocation5 + $0x1bc] sm:$0xf]
    %v751 = vld [vmem:[#allocation5 + $0x1c0] sm:$0xf]
    %v752 = vld [vmem:[#allocation5 + $0x1c4] sm:$0xf]
    %v753 = vld [vmem:[#allocation5 + $0x1c8] sm:$0xf]
    %v754 = vld [vmem:[#allocation5 + $0x1cc] sm:$0xf]
    %v755 = vld [vmem:[#allocation5 + $0x1d0] sm:$0xf]
    %v756 = vld [vmem:[#allocation5 + $0x1d4] sm:$0xf]
    %v757 = vld [vmem:[#allocation5 + $0x1d8] sm:$0xf]
    %v758 = vld [vmem:[#allocation5 + $0x1dc] sm:$0xf]
    %v759 = vld [vmem:[#allocation5 + $0x1e0] sm:$0xf]
    %v760 = vld [vmem:[#allocation5 + $0x1e4] sm:$0xf]
    %v761 = vld [vmem:[#allocation5 + $0x1e8] sm:$0xf]
    %v762 = vld [vmem:[#allocation5 + $0x1ec] sm:$0xf]
    %v763 = vld [vmem:[#allocation5 + $0x1f0] sm:$0xf]
    %v764 = vld [vmem:[#allocation5 + $0x1f4] sm:$0xf]
    %v765 = vld [vmem:[#allocation5 + $0x1f8] sm:$0xf]
    %v766 = vld [vmem:[#allocation5 + $0x1fc] sm:$0xf]
    %v767 = vld [vmem:[#allocation5 + $0x200] sm:$0xf]
    %v768 = vld [vmem:[#allocation5 + $0x204] sm:$0xf]
    %v769 = vld [vmem:[#allocation5 + $0x208] sm:$0xf]
    %v770 = vld [vmem:[#allocation5 + $0x20c] sm:$0xf]
    %v771 = vld [vmem:[#allocation5 + $0x210] sm:$0xf]
    %v772 = vld [vmem:[#allocation5 + $0x214] sm:$0xf]
    %v773 = vld [vmem:[#allocation5 + $0x218] sm:$0xf]
    %v774 = vld [vmem:[#allocation5 + $0x21c] sm:$0xf]
    %v775 = vld [vmem:[#allocation5 + $0x220] sm:$0xf]
    %v776 = vld [vmem:[#allocation5 + $0x224] sm:$0xf]
    %v777 = vld [vmem:[#allocation5 + $0x228] sm:$0xf]
    %v778 = vld [vmem:[#allocation5 + $0x22c] sm:$0xf]
    %v779 = vld [vmem:[#allocation5 + $0x230] sm:$0xf]
    %v780 = vld [vmem:[#allocation5 + $0x234] sm:$0xf]
    %v781 = vld [vmem:[#allocation5 + $0x238] sm:$0xf]
    %v782 = vld [vmem:[#allocation5 + $0x23c] sm:$0xf]
    %v783 = vld [vmem:[#allocation5 + $0x240] sm:$0xf]
    %v784 = vld [vmem:[#allocation5 + $0x244] sm:$0xf]
    %v785 = vld [vmem:[#allocation5 + $0x248] sm:$0x1]
    %v786 = vunpack.c.l.bf16 %v785
    %v787 = vld [vmem:[#allocation5 + $0x248] sm:$0x2]
    %v788 = vunpack.c.l.bf16 %v787
    %v789 = vlaneseq
    %v790 = vshrl.u32 %v789, 7
    %v791 = vsub.s32 0, %v790
    %v792 = vrot.slane %v786, %v791
    %v841 = vunpack.c.l.b16 %v737
    %v842 = vunpack.c.l.b16 %v738
    %v843 = vunpack.c.l.b16 %v739
    %v844 = vunpack.c.l.b16 %v740
    %v845 = vunpack.c.l.b16 %v741
    %v846 = vunpack.c.l.b16 %v742
    %v847 = vunpack.c.l.b16 %v743
    %v848 = vunpack.c.l.b16 %v744
    %v849 = vunpack.c.l.b16 %v745
    %v850 = vunpack.c.l.b16 %v746
    %v851 = vunpack.c.l.b16 %v747
    %v852 = vunpack.c.l.b16 %v748
    %v853 = vunpack.c.l.b16 %v749
    %v854 = vunpack.c.l.b16 %v750
    %v855 = vunpack.c.l.b16 %v751
    %v856 = vunpack.c.l.b16 %v752
    %v857 = vunpack.c.l.b16 %v753
    %v858 = vunpack.c.l.b16 %v754
    %v859 = vunpack.c.l.b16 %v755
    %v860 = vunpack.c.l.b16 %v756
    %v861 = vunpack.c.l.b16 %v757
    %v862 = vunpack.c.l.b16 %v758
    %v863 = vunpack.c.l.b16 %v759
    %v864 = vunpack.c.l.b16 %v760
    %v865 = vunpack.c.l.b16 %v761
    %v866 = vunpack.c.l.b16 %v762
    %v867 = vunpack.c.l.b16 %v763
    %v868 = vunpack.c.l.b16 %v764
    %v869 = vunpack.c.l.b16 %v765
    %v870 = vunpack.c.l.b16 %v766
    %v871 = vunpack.c.l.b16 %v767
    %v872 = vunpack.c.l.b16 %v768
    %v873 = vunpack.c.l.b16 %v769
    %v874 = vunpack.c.l.b16 %v770
    %v875 = vunpack.c.l.b16 %v771
    %v876 = vunpack.c.l.b16 %v772
    %v877 = vunpack.c.l.b16 %v773
    %v878 = vunpack.c.l.b16 %v774
    %v879 = vunpack.c.l.b16 %v775
    %v880 = vunpack.c.l.b16 %v776
    %v881 = vunpack.c.l.b16 %v777
    %v882 = vunpack.c.l.b16 %v778
    %v883 = vunpack.c.l.b16 %v779
    %v884 = vunpack.c.l.b16 %v780
    %v885 = vunpack.c.l.b16 %v781
    %v886 = vunpack.c.l.b16 %v782
    %v887 = vunpack.c.l.b16 %v783
    %v888 = vunpack.c.l.b16 %v784
    %v889 = vpack.c.b16 %v842, %v841
    %v890 = vpack.c.b16 %v844, %v843
    %v891 = vpack.c.b16 %v846, %v845
    %v892 = vpack.c.b16 %v848, %v847
    %v893 = vpack.c.b16 %v850, %v849
    %v894 = vpack.c.b16 %v852, %v851
    %v895 = vpack.c.b16 %v854, %v853
    %v896 = vpack.c.b16 %v856, %v855
    %v897 = vpack.c.b16 %v858, %v857
    %v898 = vpack.c.b16 %v860, %v859
    %v899 = vpack.c.b16 %v862, %v861
    %v900 = vpack.c.b16 %v864, %v863
    %v901 = vpack.c.b16 %v866, %v865
    %v902 = vpack.c.b16 %v868, %v867
    %v903 = vpack.c.b16 %v870, %v869
    %v904 = vpack.c.b16 %v872, %v871
    %v905 = vpack.c.b16 %v874, %v873
    %v906 = vpack.c.b16 %v876, %v875
    %v907 = vpack.c.b16 %v878, %v877
    %v908 = vpack.c.b16 %v880, %v879
    %v909 = vpack.c.b16 %v882, %v881
    %v910 = vpack.c.b16 %v884, %v883
    %v911 = vpack.c.b16 %v886, %v885
    %v912 = vpack.c.b16 %v888, %v887
    %937 = vmatprep.subr.bf16.mxu0 0
    %938 = vmatpush1.bf16.msra.mxu0 %v896
    %939 = vmatprep.subr.bf16.mxu0 0
    %940 = vmatpush1.bf16.msra.mxu0 %v895
    %941 = vmatprep.subr.bf16.mxu0 0
    %942 = vmatpush1.bf16.msra.mxu0 %v894
    %943 = vmatprep.subr.bf16.mxu0 0
    %944 = vmatpush1.bf16.msra.mxu0 %v893
    %945 = vmatprep.subr.bf16.mxu0 0
    %946 = vmatpush1.bf16.msra.mxu0 %v892
    %947 = vmatprep.subr.bf16.mxu0 0
    %948 = vmatpush1.bf16.msra.mxu0 %v891
    %949 = vmatprep.subr.bf16.mxu0 0
    %950 = vmatpush1.bf16.msra.mxu0 %v890
    %951 = vmatprep.subr.bf16.mxu0 0
    %952 = vmatpush1.bf16.msra.mxu0 %v889
    %953 = vmatprep.subr.bf16.mxu0 0
    %954 = vmatpush2.bf16.msra.mxu0 %v904
    %955 = vmatprep.subr.bf16.mxu0 0
    %956 = vmatpush2.bf16.msra.mxu0 %v903
    %957 = vmatprep.subr.bf16.mxu0 0
    %958 = vmatpush2.bf16.msra.mxu0 %v902
    %959 = vmatprep.subr.bf16.mxu0 0
    %960 = vmatpush2.bf16.msra.mxu0 %v901
    %961 = vmatprep.subr.bf16.mxu0 0
    %962 = vmatpush2.bf16.msra.mxu0 %v900
    %963 = vmatprep.subr.bf16.mxu0 0
    %964 = vmatpush2.bf16.msra.mxu0 %v899
    %965 = vmatprep.subr.bf16.mxu0 0
    %966 = vmatpush2.bf16.msra.mxu0 %v898
    %967 = vmatprep.subr.bf16.mxu0 0
    %968 = vmatpush2.bf16.msra.mxu0 %v897
    %969 = vmatprep.mubr.bf16.mxu0 %v735
    %970 = vmatmul.mubr.bf16.gmra.mxu0 %v734
    %v971 = vpop.f32.mrf.mxu0
    %v972 = vadd.f32 %v792, %v971
    %v973 = vpop.f32.mrf.mxu0
    %v974 = vpop.f32.mrf.mxu0
    %v975 = vadd.f32 %v792, %v974
    %v976 = vpop.f32.mrf.mxu0
    %977 = vdwg.mxu0
    %978 = vmatprep.subr.bf16.mxu0 0
    %979 = vmatpush1.bf16.msra.mxu0 %v912
    %980 = vmatprep.subr.bf16.mxu0 0
    %981 = vmatpush1.bf16.msra.mxu0 %v911
    %982 = vmatprep.subr.bf16.mxu0 0
    %983 = vmatpush1.bf16.msra.mxu0 %v910
    %984 = vmatprep.subr.bf16.mxu0 0
    %985 = vmatpush1.bf16.msra.mxu0 %v909
    %986 = vmatprep.subr.bf16.mxu0 0
    %987 = vmatpush1.bf16.msra.mxu0 %v908
    %988 = vmatprep.subr.bf16.mxu0 0
    %989 = vmatpush1.bf16.msra.mxu0 %v907
    %990 = vmatprep.subr.bf16.mxu0 0
    %991 = vmatpush1.bf16.msra.mxu0 %v906
    %992 = vmatprep.subr.bf16.mxu0 0
    %993 = vmatpush1.bf16.msra.mxu0 %v905
    %994 = vmatprep.subr.bf16.mxu0 0
    %995 = vmatpush2.bf16.msra.mxu0 0
    %996 = vmatprep.subr.bf16.mxu0 0
    %997 = vmatpush2.bf16.msra.mxu0 0
    %998 = vmatprep.subr.bf16.mxu0 0
    %999 = vmatpush2.bf16.msra.mxu0 0
    %1000 = vmatprep.subr.bf16.mxu0 0
    %1001 = vmatpush2.bf16.msra.mxu0 0
    %1002 = vmatprep.subr.bf16.mxu0 0
    %1003 = vmatpush2.bf16.msra.mxu0 0
    %1004 = vmatprep.subr.bf16.mxu0 0
    %1005 = vmatpush2.bf16.msra.mxu0 0
    %1006 = vmatprep.subr.bf16.mxu0 0
    %1007 = vmatpush2.bf16.msra.mxu0 0
    %1008 = vmatprep.subr.bf16.mxu0 0
    %1009 = vmatpush2.bf16.msra.mxu0 0
    %1010 = vmatprep.mubr.bf16.mxu0 0
    %1011 = vmatmul.mubr.bf16.gmra.mxu0 %v736
    %v1012 = vpop.f32.mrf.mxu0
    %v1013 = vadd.f32 %v972, %v1012
    %v1014 = vpop.f32.mrf.mxu0
    %v1015 = vpop.f32.mrf.mxu0
    %v1016 = vadd.f32 %v975, %v1015
    %v1017 = vpop.f32.mrf.mxu0
    %1018 = vdwg.mxu0
    %v1019 = vmax.f32 %v1013, 0.0
    %v1020 = vmax.f32 %v1016, 0.0
    %v1021 = vadd.f32 %v1019, %v1020
    %v1022 = vrot.slane %v1021, 4
    %v1023 = vadd.f32 %v1021, %v1022
    %v1024 = vrot.slane %v1023, 2
    %v1025 = vadd.f32 %v1023, %v1024
    %v1026 = vrot.slane %v1025, 1
    %v1027 = vadd.f32 %v1025, %v1026
    %v1028 = vmul.f32 %v1019, %v1019
    %v1029 = vmul.f32 %v1020, %v1020
    %v1030 = vadd.f32 %v1028, %v1029
    %v1031 = vrot.slane %v1030, 4
    %v1032 = vadd.f32 %v1030, %v1031
    %v1033 = vrot.slane %v1032, 2
    %v1034 = vadd.f32 %v1032, %v1033
    %v1035 = vrot.slane %v1034, 1
    %v1036 = vadd.f32 %v1034, %v1035
    %v1037 = vsel %vm577, %v1027, %v1036
    %v1038 = vld [vmem:[#allocation5 + $0x250] sm:$0xf]
    %v1039 = vld [vmem:[#allocation5 + $0x254] sm:$0xf]
    %v1040 = vld [vmem:[#allocation5 + $0x258] sm:$0xf]
    %v1041 = vld [vmem:[#allocation5 + $0x25c] sm:$0xf]
    %v1042 = vld [vmem:[#allocation5 + $0x260] sm:$0xf]
    %v1043 = vld [vmem:[#allocation5 + $0x264] sm:$0xf]
    %v1044 = vld [vmem:[#allocation5 + $0x268] sm:$0xf]
    %v1045 = vld [vmem:[#allocation5 + $0x26c] sm:$0xf]
    %v1046 = vld [vmem:[#allocation5 + $0x270] sm:$0xf]
    %v1047 = vld [vmem:[#allocation5 + $0x274] sm:$0xf]
    %v1048 = vld [vmem:[#allocation5 + $0x278] sm:$0xf]
    %v1049 = vld [vmem:[#allocation5 + $0x27c] sm:$0xf]
    %v1050 = vld [vmem:[#allocation5 + $0x280] sm:$0xf]
    %v1051 = vld [vmem:[#allocation5 + $0x284] sm:$0xf]
    %v1052 = vld [vmem:[#allocation5 + $0x288] sm:$0xf]
    %v1053 = vld [vmem:[#allocation5 + $0x28c] sm:$0xf]
    %v1054 = vunpack.c.l.bf16 %v1038
    %v1055 = vunpack.c.l.bf16 %v1039
    %v1056 = vunpack.c.l.bf16 %v1040
    %v1057 = vunpack.c.l.bf16 %v1041
    %v1058 = vunpack.c.l.bf16 %v1042
    %v1059 = vunpack.c.l.bf16 %v1043
    %v1060 = vunpack.c.l.bf16 %v1044
    %v1061 = vunpack.c.l.bf16 %v1045
    %v1062 = vunpack.c.l.bf16 %v1046
    %v1063 = vunpack.c.l.bf16 %v1047
    %v1064 = vunpack.c.l.bf16 %v1048
    %v1065 = vunpack.c.l.bf16 %v1049
    %v1066 = vunpack.c.l.bf16 %v1050
    %v1067 = vunpack.c.l.bf16 %v1051
    %v1068 = vunpack.c.l.bf16 %v1052
    %v1069 = vunpack.c.l.bf16 %v1053
    %1070 = vmatprep.subr.mxu0 0.0
    %1071 = vmatpush1.msra.mxu0 %v1069
    %1072 = vmatprep.subr.mxu0 0.0
    %1073 = vmatpush1.msra.mxu0 %v1068
    %1074 = vmatprep.subr.mxu0 0.0
    %1075 = vmatpush1.msra.mxu0 %v1067
    %1076 = vmatprep.subr.mxu0 0.0
    %1077 = vmatpush1.msra.mxu0 %v1066
    %1078 = vmatprep.subr.mxu0 0.0
    %1079 = vmatpush1.msra.mxu0 %v1065
    %1080 = vmatprep.subr.mxu0 0.0
    %1081 = vmatpush1.msra.mxu0 %v1064
    %1082 = vmatprep.subr.mxu0 0.0
    %1083 = vmatpush1.msra.mxu0 %v1063
    %1084 = vmatprep.subr.mxu0 0.0
    %1085 = vmatpush1.msra.mxu0 %v1062
    %1086 = vmatprep.subr.mxu0 0.0
    %1087 = vmatpush1.msra.mxu0 %v1061
    %1088 = vmatprep.subr.mxu0 0.0
    %1089 = vmatpush1.msra.mxu0 %v1060
    %1090 = vmatprep.subr.mxu0 0.0
    %1091 = vmatpush1.msra.mxu0 %v1059
    %1092 = vmatprep.subr.mxu0 0.0
    %1093 = vmatpush1.msra.mxu0 %v1058
    %1094 = vmatprep.subr.mxu0 0.0
    %1095 = vmatpush1.msra.mxu0 %v1057
    %1096 = vmatprep.subr.mxu0 0.0
    %1097 = vmatpush1.msra.mxu0 %v1056
    %1098 = vmatprep.subr.mxu0 0.0
    %1099 = vmatpush1.msra.mxu0 %v1055
    %1100 = vmatprep.subr.mxu0 0.0
    %1101 = vmatpush1.msra.mxu0 %v1054
    %1102 = vmatprep.subr.mxu0 0.0
    %1103 = vmatpush2.msra.mxu0 0.0
    %1104 = vmatprep.subr.mxu0 0.0
    %1105 = vmatpush2.msra.mxu0 0.0
    %1106 = vmatprep.subr.mxu0 0.0
    %1107 = vmatpush2.msra.mxu0 0.0
    %1108 = vmatprep.subr.mxu0 0.0
    %1109 = vmatpush2.msra.mxu0 0.0
    %1110 = vmatprep.subr.mxu0 0.0
    %1111 = vmatpush2.msra.mxu0 0.0
    %1112 = vmatprep.subr.mxu0 0.0
    %1113 = vmatpush2.msra.mxu0 0.0
    %1114 = vmatprep.subr.mxu0 0.0
    %1115 = vmatpush2.msra.mxu0 0.0
    %1116 = vmatprep.subr.mxu0 0.0
    %1117 = vmatpush2.msra.mxu0 0.0
    %1118 = vmatprep.subr.mxu0 0.0
    %1119 = vmatpush2.msra.mxu0 0.0
    %1120 = vmatprep.subr.mxu0 0.0
    %1121 = vmatpush2.msra.mxu0 0.0
    %1122 = vmatprep.subr.mxu0 0.0
    %1123 = vmatpush2.msra.mxu0 0.0
    %1124 = vmatprep.subr.mxu0 0.0
    %1125 = vmatpush2.msra.mxu0 0.0
    %1126 = vmatprep.subr.mxu0 0.0
    %1127 = vmatpush2.msra.mxu0 0.0
    %1128 = vmatprep.subr.mxu0 0.0
    %1129 = vmatpush2.msra.mxu0 0.0
    %1130 = vmatprep.subr.mxu0 0.0
    %1131 = vmatpush2.msra.mxu0 0.0
    %1132 = vmatprep.subr.mxu0 0.0
    %1133 = vmatpush2.msra.mxu0 0.0
    %1134 = vmatprep.mubr.f32.mxu0 0.0
    %1135 = vmatmul.mubr.f32.gmra.mxu0 %v1037
    %v1136 = vpop.f32.mrf.mxu0
    %v1137 = vadd.f32 0.0, %v1136
    %v1138 = vpop.f32.mrf.mxu0
    %1139 = vdwg.mxu0
    %v1140 = vmul.f32 %v1137, 0.0078125
    %v1141 = vmul.f32 %v1140, %v1140
    %v1143 = vrot.slane %v1141, 7
    %v1145 = vsub.f32 %v1140, %v1143
    %v1146 = vadd.f32 %v1145, 1e-05
    %v1147 = vrsqrt.pop %v1146
    %v1148 = vmul.f32 %v786, %v1147
    %v1150 = vrot.slane %v1148, 1
    %v1152 = vmul.f32 %v1140, %v1150
    %v1154 = vrot.slane %v1152, 6
    %v1156 = vsub.f32 %v788, %v1154
    %v1157 = vlaneseq
    %v1158 = vshrl.u32 %v1157, 7
    %v1159 = vsub.s32 1, %v1158
    %v1160 = vrot.slane %v1148, %v1159
    %v1161 = vmul.f32 %v1019, %v1160
    %v1162 = vmul.f32 %v1020, %v1160
    %v1163 = vlaneseq
    %v1164 = vshrl.u32 %v1163, 7
    %v1165 = vsub.s32 2, %v1164
    %v1166 = vrot.slane %v1156, %v1165
    %v1167 = vadd.f32 %v1161, %v1166
    %v1168 = vadd.f32 %v1162, %v1166
    %1169 = vst [vmem:[#allocation3] sm:$0xff] 0.0
    %1170 = vst [vmem:[#allocation3 + $0x8] sm:$0xff] 0.0
    %1171 = vst [vmem:[#allocation3 + $0x10] sm:$0xf] 0.0
    %1172 = vst [vmem:[#allocation3 + $0x1] sm:$0xff] %v1167
    %1173 = vst [vmem:[#allocation3 + $0xb] sm:$0xff] %v1168
    %v1174 = vld [vmem:[#allocation3] ss:$2 sm:$0xf]
    %s1175 = scalar_lea.vmem [#allocation3], 1
    %v1176 = vld [vmem:[%s1175] ss:$2 sm:$0xf]
    %s1177 = scalar_lea.vmem [#allocation3], 2
    %v1178 = vld [vmem:[%s1177] ss:$2 sm:$0xf]
    %s1179 = scalar_lea.vmem [#allocation3], 10
    %v1180 = vld [vmem:[%s1179] ss:$2 sm:$0xf]
    %s1181 = scalar_lea.vmem [#allocation3], 11
    %v1182 = vld [vmem:[%s1181] ss:$2 sm:$0xf]
    %s1183 = scalar_lea.vmem [#allocation3], 12
    %v1184 = vld [vmem:[%s1183] ss:$2 sm:$0xf]
    %v1188 = vrot.slane %v1180, 4
    %v1189 = vrot.slane %v1182, 4
    %v1190 = vrot.slane %v1184, 4
    %vm1194 = vcmask 1043456
    %v1195 = vsel %vm1194, %v1174, %v1188
    %v1196 = vsel %vm1194, %v1176, %v1189
    %v1197 = vsel %vm1194, %v1178, %v1190
    %v1198 = vpack.c.bf16 %v1195, %v1195
    %v1199 = vpack.c.bf16 %v1196, %v1196
    %v1200 = vpack.c.bf16 %v1197, %v1197
    %v1201 = vld [vmem:[#allocation5 + $0x290] sm:$0xf]
    %v1202 = vld [vmem:[#allocation5 + $0x294] sm:$0xf]
    %v1203 = vld [vmem:[#allocation5 + $0x298] sm:$0xf]
    %v1204 = vld [vmem:[#allocation5 + $0x29c] sm:$0xf]
    %v1205 = vld [vmem:[#allocation5 + $0x2a0] sm:$0xf]
    %v1206 = vld [vmem:[#allocation5 + $0x2a4] sm:$0xf]
    %v1207 = vld [vmem:[#allocation5 + $0x2a8] sm:$0xf]
    %v1208 = vld [vmem:[#allocation5 + $0x2ac] sm:$0xf]
    %v1209 = vld [vmem:[#allocation5 + $0x2b0] sm:$0xf]
    %v1210 = vld [vmem:[#allocation5 + $0x2b4] sm:$0xf]
    %v1211 = vld [vmem:[#allocation5 + $0x2b8] sm:$0xf]
    %v1212 = vld [vmem:[#allocation5 + $0x2bc] sm:$0xf]
    %v1213 = vld [vmem:[#allocation5 + $0x2c0] sm:$0xf]
    %v1214 = vld [vmem:[#allocation5 + $0x2c4] sm:$0xf]
    %v1215 = vld [vmem:[#allocation5 + $0x2c8] sm:$0xf]
    %v1216 = vld [vmem:[#allocation5 + $0x2cc] sm:$0xf]
    %v1217 = vld [vmem:[#allocation5 + $0x2d0] sm:$0xf]
    %v1218 = vld [vmem:[#allocation5 + $0x2d4] sm:$0xf]
    %v1219 = vld [vmem:[#allocation5 + $0x2d8] sm:$0xf]
    %v1220 = vld [vmem:[#allocation5 + $0x2dc] sm:$0xf]
    %v1221 = vld [vmem:[#allocation5 + $0x2e0] sm:$0xf]
    %v1222 = vld [vmem:[#allocation5 + $0x2e4] sm:$0xf]
    %v1223 = vld [vmem:[#allocation5 + $0x2e8] sm:$0xf]
    %v1224 = vld [vmem:[#allocation5 + $0x2ec] sm:$0xf]
    %v1225 = vld [vmem:[#allocation5 + $0x2f0] sm:$0xf]
    %v1226 = vld [vmem:[#allocation5 + $0x2f4] sm:$0xf]
    %v1227 = vld [vmem:[#allocation5 + $0x2f8] sm:$0xf]
    %v1228 = vld [vmem:[#allocation5 + $0x2fc] sm:$0xf]
    %v1229 = vld [vmem:[#allocation5 + $0x300] sm:$0xf]
    %v1230 = vld [vmem:[#allocation5 + $0x304] sm:$0xf]
    %v1231 = vld [vmem:[#allocation5 + $0x308] sm:$0xf]
    %v1232 = vld [vmem:[#allocation5 + $0x30c] sm:$0xf]
    %v1233 = vld [vmem:[#allocation5 + $0x310] sm:$0xf]
    %v1234 = vld [vmem:[#allocation5 + $0x314] sm:$0xf]
    %v1235 = vld [vmem:[#allocation5 + $0x318] sm:$0xf]
    %v1236 = vld [vmem:[#allocation5 + $0x31c] sm:$0xf]
    %v1237 = vld [vmem:[#allocation5 + $0x320] sm:$0xf]
    %v1238 = vld [vmem:[#allocation5 + $0x324] sm:$0xf]
    %v1239 = vld [vmem:[#allocation5 + $0x328] sm:$0xf]
    %v1240 = vld [vmem:[#allocation5 + $0x32c] sm:$0xf]
    %v1241 = vld [vmem:[#allocation5 + $0x330] sm:$0xf]
    %v1242 = vld [vmem:[#allocation5 + $0x334] sm:$0xf]
    %v1243 = vld [vmem:[#allocation5 + $0x338] sm:$0xf]
    %v1244 = vld [vmem:[#allocation5 + $0x33c] sm:$0xf]
    %v1245 = vld [vmem:[#allocation5 + $0x340] sm:$0xf]
    %v1246 = vld [vmem:[#allocation5 + $0x344] sm:$0xf]
    %v1247 = vld [vmem:[#allocation5 + $0x348] sm:$0xf]
    %v1248 = vld [vmem:[#allocation5 + $0x34c] sm:$0xf]
    %v1249 = vld [vmem:[#allocation5 + $0x350] sm:$0x1]
    %v1250 = vunpack.c.l.bf16 %v1249
    %v1251 = vld [vmem:[#allocation5 + $0x350] sm:$0x2]
    %v1252 = vunpack.c.l.bf16 %v1251
    %v1253 = vlaneseq
    %v1254 = vshrl.u32 %v1253, 7
    %v1255 = vsub.s32 0, %v1254
    %v1256 = vrot.slane %v1250, %v1255
    %v1305 = vunpack.c.l.b16 %v1201
    %v1306 = vunpack.c.l.b16 %v1202
    %v1307 = vunpack.c.l.b16 %v1203
    %v1308 = vunpack.c.l.b16 %v1204
    %v1309 = vunpack.c.l.b16 %v1205
    %v1310 = vunpack.c.l.b16 %v1206
    %v1311 = vunpack.c.l.b16 %v1207
    %v1312 = vunpack.c.l.b16 %v1208
    %v1313 = vunpack.c.l.b16 %v1209
    %v1314 = vunpack.c.l.b16 %v1210
    %v1315 = vunpack.c.l.b16 %v1211
    %v1316 = vunpack.c.l.b16 %v1212
    %v1317 = vunpack.c.l.b16 %v1213
    %v1318 = vunpack.c.l.b16 %v1214
    %v1319 = vunpack.c.l.b16 %v1215
    %v1320 = vunpack.c.l.b16 %v1216
    %v1321 = vunpack.c.l.b16 %v1217
    %v1322 = vunpack.c.l.b16 %v1218
    %v1323 = vunpack.c.l.b16 %v1219
    %v1324 = vunpack.c.l.b16 %v1220
    %v1325 = vunpack.c.l.b16 %v1221
    %v1326 = vunpack.c.l.b16 %v1222
    %v1327 = vunpack.c.l.b16 %v1223
    %v1328 = vunpack.c.l.b16 %v1224
    %v1329 = vunpack.c.l.b16 %v1225
    %v1330 = vunpack.c.l.b16 %v1226
    %v1331 = vunpack.c.l.b16 %v1227
    %v1332 = vunpack.c.l.b16 %v1228
    %v1333 = vunpack.c.l.b16 %v1229
    %v1334 = vunpack.c.l.b16 %v1230
    %v1335 = vunpack.c.l.b16 %v1231
    %v1336 = vunpack.c.l.b16 %v1232
    %v1337 = vunpack.c.l.b16 %v1233
    %v1338 = vunpack.c.l.b16 %v1234
    %v1339 = vunpack.c.l.b16 %v1235
    %v1340 = vunpack.c.l.b16 %v1236
    %v1341 = vunpack.c.l.b16 %v1237
    %v1342 = vunpack.c.l.b16 %v1238
    %v1343 = vunpack.c.l.b16 %v1239
    %v1344 = vunpack.c.l.b16 %v1240
    %v1345 = vunpack.c.l.b16 %v1241
    %v1346 = vunpack.c.l.b16 %v1242
    %v1347 = vunpack.c.l.b16 %v1243
    %v1348 = vunpack.c.l.b16 %v1244
    %v1349 = vunpack.c.l.b16 %v1245
    %v1350 = vunpack.c.l.b16 %v1246
    %v1351 = vunpack.c.l.b16 %v1247
    %v1352 = vunpack.c.l.b16 %v1248
    %v1353 = vpack.c.b16 %v1306, %v1305
    %v1354 = vpack.c.b16 %v1308, %v1307
    %v1355 = vpack.c.b16 %v1310, %v1309
    %v1356 = vpack.c.b16 %v1312, %v1311
    %v1357 = vpack.c.b16 %v1314, %v1313
    %v1358 = vpack.c.b16 %v1316, %v1315
    %v1359 = vpack.c.b16 %v1318, %v1317
    %v1360 = vpack.c.b16 %v1320, %v1319
    %v1361 = vpack.c.b16 %v1322, %v1321
    %v1362 = vpack.c.b16 %v1324, %v1323
    %v1363 = vpack.c.b16 %v1326, %v1325
    %v1364 = vpack.c.b16 %v1328, %v1327
    %v1365 = vpack.c.b16 %v1330, %v1329
    %v1366 = vpack.c.b16 %v1332, %v1331
    %v1367 = vpack.c.b16 %v1334, %v1333
    %v1368 = vpack.c.b16 %v1336, %v1335
    %v1369 = vpack.c.b16 %v1338, %v1337
    %v1370 = vpack.c.b16 %v1340, %v1339
    %v1371 = vpack.c.b16 %v1342, %v1341
    %v1372 = vpack.c.b16 %v1344, %v1343
    %v1373 = vpack.c.b16 %v1346, %v1345
    %v1374 = vpack.c.b16 %v1348, %v1347
    %v1375 = vpack.c.b16 %v1350, %v1349
    %v1376 = vpack.c.b16 %v1352, %v1351
    %1401 = vmatprep.subr.bf16.mxu0 0
    %1402 = vmatpush1.bf16.msra.mxu0 %v1360
    %1403 = vmatprep.subr.bf16.mxu0 0
    %1404 = vmatpush1.bf16.msra.mxu0 %v1359
    %1405 = vmatprep.subr.bf16.mxu0 0
    %1406 = vmatpush1.bf16.msra.mxu0 %v1358
    %1407 = vmatprep.subr.bf16.mxu0 0
    %1408 = vmatpush1.bf16.msra.mxu0 %v1357
    %1409 = vmatprep.subr.bf16.mxu0 0
    %1410 = vmatpush1.bf16.msra.mxu0 %v1356
    %1411 = vmatprep.subr.bf16.mxu0 0
    %1412 = vmatpush1.bf16.msra.mxu0 %v1355
    %1413 = vmatprep.subr.bf16.mxu0 0
    %1414 = vmatpush1.bf16.msra.mxu0 %v1354
    %1415 = vmatprep.subr.bf16.mxu0 0
    %1416 = vmatpush1.bf16.msra.mxu0 %v1353
    %1417 = vmatprep.subr.bf16.mxu0 0
    %1418 = vmatpush2.bf16.msra.mxu0 %v1368
    %1419 = vmatprep.subr.bf16.mxu0 0
    %1420 = vmatpush2.bf16.msra.mxu0 %v1367
    %1421 = vmatprep.subr.bf16.mxu0 0
    %1422 = vmatpush2.bf16.msra.mxu0 %v1366
    %1423 = vmatprep.subr.bf16.mxu0 0
    %1424 = vmatpush2.bf16.msra.mxu0 %v1365
    %1425 = vmatprep.subr.bf16.mxu0 0
    %1426 = vmatpush2.bf16.msra.mxu0 %v1364
    %1427 = vmatprep.subr.bf16.mxu0 0
    %1428 = vmatpush2.bf16.msra.mxu0 %v1363
    %1429 = vmatprep.subr.bf16.mxu0 0
    %1430 = vmatpush2.bf16.msra.mxu0 %v1362
    %1431 = vmatprep.subr.bf16.mxu0 0
    %1432 = vmatpush2.bf16.msra.mxu0 %v1361
    %1433 = vmatprep.mubr.bf16.mxu0 %v1199
    %1434 = vmatmul.mubr.bf16.gmra.mxu0 %v1198
    %v1435 = vpop.f32.mrf.mxu0
    %v1436 = vadd.f32 %v1256, %v1435
    %v1437 = vpop.f32.mrf.mxu0
    %v1438 = vpop.f32.mrf.mxu0
    %v1439 = vpop.f32.mrf.mxu0
    %1440 = vdwg.mxu0
    %1441 = vmatprep.subr.bf16.mxu0 0
    %1442 = vmatpush1.bf16.msra.mxu0 %v1376
    %1443 = vmatprep.subr.bf16.mxu0 0
    %1444 = vmatpush1.bf16.msra.mxu0 %v1375
    %1445 = vmatprep.subr.bf16.mxu0 0
    %1446 = vmatpush1.bf16.msra.mxu0 %v1374
    %1447 = vmatprep.subr.bf16.mxu0 0
    %1448 = vmatpush1.bf16.msra.mxu0 %v1373
    %1449 = vmatprep.subr.bf16.mxu0 0
    %1450 = vmatpush1.bf16.msra.mxu0 %v1372
    %1451 = vmatprep.subr.bf16.mxu0 0
    %1452 = vmatpush1.bf16.msra.mxu0 %v1371
    %1453 = vmatprep.subr.bf16.mxu0 0
    %1454 = vmatpush1.bf16.msra.mxu0 %v1370
    %1455 = vmatprep.subr.bf16.mxu0 0
    %1456 = vmatpush1.bf16.msra.mxu0 %v1369
    %1457 = vmatprep.subr.bf16.mxu0 0
    %1458 = vmatpush2.bf16.msra.mxu0 0
    %1459 = vmatprep.subr.bf16.mxu0 0
    %1460 = vmatpush2.bf16.msra.mxu0 0
    %1461 = vmatprep.subr.bf16.mxu0 0
    %1462 = vmatpush2.bf16.msra.mxu0 0
    %1463 = vmatprep.subr.bf16.mxu0 0
    %1464 = vmatpush2.bf16.msra.mxu0 0
    %1465 = vmatprep.subr.bf16.mxu0 0
    %1466 = vmatpush2.bf16.msra.mxu0 0
    %1467 = vmatprep.subr.bf16.mxu0 0
    %1468 = vmatpush2.bf16.msra.mxu0 0
    %1469 = vmatprep.subr.bf16.mxu0 0
    %1470 = vmatpush2.bf16.msra.mxu0 0
    %1471 = vmatprep.subr.bf16.mxu0 0
    %1472 = vmatpush2.bf16.msra.mxu0 0
    %1473 = vmatprep.mubr.bf16.mxu0 0
    %1474 = vmatmul.mubr.bf16.gmra.mxu0 %v1200
    %v1475 = vpop.f32.mrf.mxu0
    %v1476 = vadd.f32 %v1436, %v1475
    %v1477 = vpop.f32.mrf.mxu0
    %v1478 = vpop.f32.mrf.mxu0
    %v1479 = vpop.f32.mrf.mxu0
    %1480 = vdwg.mxu0
    %v1481 = vmax.f32 %v1476, 0.0
    %v1482 = vrot.slane %v1481, 4
    %v1483 = vadd.f32 %v1481, %v1482
    %v1484 = vrot.slane %v1483, 2
    %v1485 = vadd.f32 %v1483, %v1484
    %v1486 = vrot.slane %v1485, 1
    %v1487 = vadd.f32 %v1485, %v1486
    %v1488 = vmul.f32 %v1481, %v1481
    %v1489 = vrot.slane %v1488, 4
    %v1490 = vadd.f32 %v1488, %v1489
    %v1491 = vrot.slane %v1490, 2
    %v1492 = vadd.f32 %v1490, %v1491
    %v1493 = vrot.slane %v1492, 1
    %v1494 = vadd.f32 %v1492, %v1493
    %v1495 = vsel %vm577, %v1487, %v1494
    %v1496 = vld [vmem:[#allocation5 + $0x358] sm:$0xf]
    %v1497 = vld [vmem:[#allocation5 + $0x35c] sm:$0xf]
    %v1498 = vld [vmem:[#allocation5 + $0x360] sm:$0xf]
    %v1499 = vld [vmem:[#allocation5 + $0x364] sm:$0xf]
    %v1500 = vld [vmem:[#allocation5 + $0x368] sm:$0xf]
    %v1501 = vld [vmem:[#allocation5 + $0x36c] sm:$0xf]
    %v1502 = vld [vmem:[#allocation5 + $0x370] sm:$0xf]
    %v1503 = vld [vmem:[#allocation5 + $0x374] sm:$0xf]
    %v1504 = vld [vmem:[#allocation5 + $0x378] sm:$0xf]
    %v1505 = vld [vmem:[#allocation5 + $0x37c] sm:$0xf]
    %v1506 = vld [vmem:[#allocation5 + $0x380] sm:$0xf]
    %v1507 = vld [vmem:[#allocation5 + $0x384] sm:$0xf]
    %v1508 = vld [vmem:[#allocation5 + $0x388] sm:$0xf]
    %v1509 = vld [vmem:[#allocation5 + $0x38c] sm:$0xf]
    %v1510 = vld [vmem:[#allocation5 + $0x390] sm:$0xf]
    %v1511 = vld [vmem:[#allocation5 + $0x394] sm:$0xf]
    %v1512 = vunpack.c.l.bf16 %v1496
    %v1513 = vunpack.c.l.bf16 %v1497
    %v1514 = vunpack.c.l.bf16 %v1498
    %v1515 = vunpack.c.l.bf16 %v1499
    %v1516 = vunpack.c.l.bf16 %v1500
    %v1517 = vunpack.c.l.bf16 %v1501
    %v1518 = vunpack.c.l.bf16 %v1502
    %v1519 = vunpack.c.l.bf16 %v1503
    %v1520 = vunpack.c.l.bf16 %v1504
    %v1521 = vunpack.c.l.bf16 %v1505
    %v1522 = vunpack.c.l.bf16 %v1506
    %v1523 = vunpack.c.l.bf16 %v1507
    %v1524 = vunpack.c.l.bf16 %v1508
    %v1525 = vunpack.c.l.bf16 %v1509
    %v1526 = vunpack.c.l.bf16 %v1510
    %v1527 = vunpack.c.l.bf16 %v1511
    %1528 = vmatprep.subr.mxu0 0.0
    %1529 = vmatpush1.msra.mxu0 %v1527
    %1530 = vmatprep.subr.mxu0 0.0
    %1531 = vmatpush1.msra.mxu0 %v1526
    %1532 = vmatprep.subr.mxu0 0.0
    %1533 = vmatpush1.msra.mxu0 %v1525
    %1534 = vmatprep.subr.mxu0 0.0
    %1535 = vmatpush1.msra.mxu0 %v1524
    %1536 = vmatprep.subr.mxu0 0.0
    %1537 = vmatpush1.msra.mxu0 %v1523
    %1538 = vmatprep.subr.mxu0 0.0
    %1539 = vmatpush1.msra.mxu0 %v1522
    %1540 = vmatprep.subr.mxu0 0.0
    %1541 = vmatpush1.msra.mxu0 %v1521
    %1542 = vmatprep.subr.mxu0 0.0
    %1543 = vmatpush1.msra.mxu0 %v1520
    %1544 = vmatprep.subr.mxu0 0.0
    %1545 = vmatpush1.msra.mxu0 %v1519
    %1546 = vmatprep.subr.mxu0 0.0
    %1547 = vmatpush1.msra.mxu0 %v1518
    %1548 = vmatprep.subr.mxu0 0.0
    %1549 = vmatpush1.msra.mxu0 %v1517
    %1550 = vmatprep.subr.mxu0 0.0
    %1551 = vmatpush1.msra.mxu0 %v1516
    %1552 = vmatprep.subr.mxu0 0.0
    %1553 = vmatpush1.msra.mxu0 %v1515
    %1554 = vmatprep.subr.mxu0 0.0
    %1555 = vmatpush1.msra.mxu0 %v1514
    %1556 = vmatprep.subr.mxu0 0.0
    %1557 = vmatpush1.msra.mxu0 %v1513
    %1558 = vmatprep.subr.mxu0 0.0
    %1559 = vmatpush1.msra.mxu0 %v1512
    %1560 = vmatprep.subr.mxu0 0.0
    %1561 = vmatpush2.msra.mxu0 0.0
    %1562 = vmatprep.subr.mxu0 0.0
    %1563 = vmatpush2.msra.mxu0 0.0
    %1564 = vmatprep.subr.mxu0 0.0
    %1565 = vmatpush2.msra.mxu0 0.0
    %1566 = vmatprep.subr.mxu0 0.0
    %1567 = vmatpush2.msra.mxu0 0.0
    %1568 = vmatprep.subr.mxu0 0.0
    %1569 = vmatpush2.msra.mxu0 0.0
    %1570 = vmatprep.subr.mxu0 0.0
    %1571 = vmatpush2.msra.mxu0 0.0
    %1572 = vmatprep.subr.mxu0 0.0
    %1573 = vmatpush2.msra.mxu0 0.0
    %1574 = vmatprep.subr.mxu0 0.0
    %1575 = vmatpush2.msra.mxu0 0.0
    %1576 = vmatprep.subr.mxu0 0.0
    %1577 = vmatpush2.msra.mxu0 0.0
    %1578 = vmatprep.subr.mxu0 0.0
    %1579 = vmatpush2.msra.mxu0 0.0
    %1580 = vmatprep.subr.mxu0 0.0
    %1581 = vmatpush2.msra.mxu0 0.0
    %1582 = vmatprep.subr.mxu0 0.0
    %1583 = vmatpush2.msra.mxu0 0.0
    %1584 = vmatprep.subr.mxu0 0.0
    %1585 = vmatpush2.msra.mxu0 0.0
    %1586 = vmatprep.subr.mxu0 0.0
    %1587 = vmatpush2.msra.mxu0 0.0
    %1588 = vmatprep.subr.mxu0 0.0
    %1589 = vmatpush2.msra.mxu0 0.0
    %1590 = vmatprep.subr.mxu0 0.0
    %1591 = vmatpush2.msra.mxu0 0.0
    %1592 = vmatprep.mubr.f32.mxu0 0.0
    %1593 = vmatmul.mubr.f32.gmra.mxu0 %v1495
    %v1594 = vpop.f32.mrf.mxu0
    %v1595 = vadd.f32 0.0, %v1594
    %v1596 = vpop.f32.mrf.mxu0
    %1597 = vdwg.mxu0
    %v1598 = vmul.f32 %v1595, 0.03125
    %v1599 = vmul.f32 %v1598, %v1598
    %v1601 = vrot.slane %v1599, 7
    %v1603 = vsub.f32 %v1598, %v1601
    %v1604 = vadd.f32 %v1603, 1e-05
    %v1605 = vrsqrt.pop %v1604
    %v1606 = vmul.f32 %v1250, %v1605
    %v1608 = vrot.slane %v1606, 1
    %v1610 = vmul.f32 %v1598, %v1608
    %v1612 = vrot.slane %v1610, 6
    %v1614 = vsub.f32 %v1252, %v1612
    %v1615 = vlaneseq
    %v1616 = vshrl.u32 %v1615, 7
    %v1617 = vsub.s32 1, %v1616
    %v1618 = vrot.slane %v1606, %v1617
    %v1619 = vmul.f32 %v1481, %v1618
    %v1620 = vlaneseq
    %v1621 = vshrl.u32 %v1620, 7
    %v1622 = vsub.s32 2, %v1621
    %v1623 = vrot.slane %v1614, %v1622
    %v1624 = vadd.f32 %v1619, %v1623
    %1625 = vst [vmem:[#allocation4] sm:$0xff] 0.0
    %1626 = vst [vmem:[#allocation4 + $0x8] sm:$0xf] 0.0
    %1627 = vst [vmem:[#allocation4 + $0x1] sm:$0xf] %v1624
    %1628 = vst [vmem:[#allocation4 + $0x3] sm:$0xf0] %v1624
    %v1629 = vld [vmem:[#allocation4] ss:$2 sm:$0x3]
    %s1630 = scalar_lea.vmem [#allocation4], 1
    %v1631 = vld [vmem:[%s1630] ss:$2 sm:$0x3]
    %s1632 = scalar_lea.vmem [#allocation4], 2
    %v1633 = vld [vmem:[%s1632] ss:$2 sm:$0x3]
    %s1634 = scalar_lea.vmem [#allocation4], 6
    %v1635 = vld [vmem:[%s1634] ss:$2 sm:$0x3]
    %s1636 = scalar_lea.vmem [#allocation4], 7
    %v1637 = vld [vmem:[%s1636] ss:$2 sm:$0x3]
    %s1638 = scalar_lea.vmem [#allocation4], 8
    %v1639 = vld [vmem:[%s1638] ss:$2 sm:$0x3]
    %v1643 = vrot.slane %v1635, 6
    %v1644 = vrot.slane %v1637, 6
    %v1645 = vrot.slane %v1639, 6
    %vm1649 = vcmask 1041408
    %v1650 = vsel %vm1649, %v1629, %v1643
    %v1651 = vsel %vm1649, %v1631, %v1644
    %v1652 = vsel %vm1649, %v1633, %v1645
    %v1653 = vpack.c.bf16 %v1650, %v1650
    %v1654 = vpack.c.bf16 %v1651, %v1651
    %v1655 = vpack.c.bf16 %v1652, %v1652
    %v1656 = vld [vmem:[#allocation5 + $0x398] sm:$0xf]
    %v1657 = vld [vmem:[#allocation5 + $0x39c] sm:$0xf]
    %v1658 = vld [vmem:[#allocation5 + $0x3a0] sm:$0xf]
    %v1659 = vld [vmem:[#allocation5 + $0x3a4] sm:$0xf]
    %v1660 = vld [vmem:[#allocation5 + $0x3a8] sm:$0xf]
    %v1661 = vld [vmem:[#allocation5 + $0x3ac] sm:$0xf]
    %v1662 = vld [vmem:[#allocation5 + $0x3b0] sm:$0xf]
    %v1663 = vld [vmem:[#allocation5 + $0x3b4] sm:$0xf]
    %v1664 = vld [vmem:[#allocation5 + $0x3b8] sm:$0xf]
    %v1665 = vld [vmem:[#allocation5 + $0x3bc] sm:$0xf]
    %v1666 = vld [vmem:[#allocation5 + $0x3c0] sm:$0xf]
    %v1667 = vld [vmem:[#allocation5 + $0x3c4] sm:$0xf]
    %v1668 = vld [vmem:[#allocation5 + $0x3c8] sm:$0xf]
    %v1669 = vld [vmem:[#allocation5 + $0x3cc] sm:$0xf]
    %v1670 = vld [vmem:[#allocation5 + $0x3d0] sm:$0xf]
    %v1671 = vld [vmem:[#allocation5 + $0x3d4] sm:$0xf]
    %v1672 = vld [vmem:[#allocation5 + $0x3d8] sm:$0xf]
    %v1673 = vld [vmem:[#allocation5 + $0x3dc] sm:$0xf]
    %v1674 = vld [vmem:[#allocation5 + $0x3e0] sm:$0xf]
    %v1675 = vld [vmem:[#allocation5 + $0x3e4] sm:$0xf]
    %v1676 = vld [vmem:[#allocation5 + $0x3e8] sm:$0xf]
    %v1677 = vld [vmem:[#allocation5 + $0x3ec] sm:$0xf]
    %v1678 = vld [vmem:[#allocation5 + $0x3f0] sm:$0xf]
    %v1679 = vld [vmem:[#allocation5 + $0x3f4] sm:$0xf]
    %v1680 = vld [vmem:[#allocation5 + $0x3f8] sm:$0xf]
    %v1681 = vld [vmem:[#allocation5 + $0x3fc] sm:$0xf]
    %v1682 = vld [vmem:[#allocation5 + $0x400] sm:$0xf]
    %v1683 = vld [vmem:[#allocation5 + $0x404] sm:$0xf]
    %v1684 = vld [vmem:[#allocation5 + $0x408] sm:$0xf]
    %v1685 = vld [vmem:[#allocation5 + $0x40c] sm:$0xf]
    %v1686 = vld [vmem:[#allocation5 + $0x410] sm:$0xf]
    %v1687 = vld [vmem:[#allocation5 + $0x414] sm:$0xf]
    %v1688 = vld [vmem:[#allocation5 + $0x418] sm:$0xf]
    %v1689 = vld [vmem:[#allocation5 + $0x41c] sm:$0xf]
    %v1690 = vld [vmem:[#allocation5 + $0x420] sm:$0xf]
    %v1691 = vld [vmem:[#allocation5 + $0x424] sm:$0xf]
    %v1692 = vld [vmem:[#allocation5 + $0x428] sm:$0xf]
    %v1693 = vld [vmem:[#allocation5 + $0x42c] sm:$0xf]
    %v1694 = vld [vmem:[#allocation5 + $0x430] sm:$0xf]
    %v1695 = vld [vmem:[#allocation5 + $0x434] sm:$0xf]
    %v1696 = vld [vmem:[#allocation5 + $0x438] sm:$0xf]
    %v1697 = vld [vmem:[#allocation5 + $0x43c] sm:$0xf]
    %v1698 = vld [vmem:[#allocation5 + $0x440] sm:$0xf]
    %v1699 = vld [vmem:[#allocation5 + $0x444] sm:$0xf]
    %v1700 = vld [vmem:[#allocation5 + $0x448] sm:$0xf]
    %v1701 = vld [vmem:[#allocation5 + $0x44c] sm:$0xf]
    %v1702 = vld [vmem:[#allocation5 + $0x450] sm:$0xf]
    %v1703 = vld [vmem:[#allocation5 + $0x454] sm:$0xf]
    %v1704 = vld [vmem:[#allocation5 + $0x458] sm:$0x1]
    %v1705 = vunpack.c.l.bf16 %v1704
    %v1706 = vld [vmem:[#allocation5 + $0x458] sm:$0x2]
    %v1707 = vunpack.c.l.bf16 %v1706
    %v1708 = vlaneseq
    %v1709 = vshrl.u32 %v1708, 7
    %v1710 = vsub.s32 0, %v1709
    %v1711 = vrot.slane %v1705, %v1710
    %v1760 = vunpack.c.l.b16 %v1656
    %v1761 = vunpack.c.l.b16 %v1657
    %v1762 = vunpack.c.l.b16 %v1658
    %v1763 = vunpack.c.l.b16 %v1659
    %v1764 = vunpack.c.l.b16 %v1660
    %v1765 = vunpack.c.l.b16 %v1661
    %v1766 = vunpack.c.l.b16 %v1662
    %v1767 = vunpack.c.l.b16 %v1663
    %v1768 = vunpack.c.l.b16 %v1664
    %v1769 = vunpack.c.l.b16 %v1665
    %v1770 = vunpack.c.l.b16 %v1666
    %v1771 = vunpack.c.l.b16 %v1667
    %v1772 = vunpack.c.l.b16 %v1668
    %v1773 = vunpack.c.l.b16 %v1669
    %v1774 = vunpack.c.l.b16 %v1670
    %v1775 = vunpack.c.l.b16 %v1671
    %v1776 = vunpack.c.l.b16 %v1672
    %v1777 = vunpack.c.l.b16 %v1673
    %v1778 = vunpack.c.l.b16 %v1674
    %v1779 = vunpack.c.l.b16 %v1675
    %v1780 = vunpack.c.l.b16 %v1676
    %v1781 = vunpack.c.l.b16 %v1677
    %v1782 = vunpack.c.l.b16 %v1678
    %v1783 = vunpack.c.l.b16 %v1679
    %v1784 = vunpack.c.l.b16 %v1680
    %v1785 = vunpack.c.l.b16 %v1681
    %v1786 = vunpack.c.l.b16 %v1682
    %v1787 = vunpack.c.l.b16 %v1683
    %v1788 = vunpack.c.l.b16 %v1684
    %v1789 = vunpack.c.l.b16 %v1685
    %v1790 = vunpack.c.l.b16 %v1686
    %v1791 = vunpack.c.l.b16 %v1687
    %v1792 = vunpack.c.l.b16 %v1688
    %v1793 = vunpack.c.l.b16 %v1689
    %v1794 = vunpack.c.l.b16 %v1690
    %v1795 = vunpack.c.l.b16 %v1691
    %v1796 = vunpack.c.l.b16 %v1692
    %v1797 = vunpack.c.l.b16 %v1693
    %v1798 = vunpack.c.l.b16 %v1694
    %v1799 = vunpack.c.l.b16 %v1695
    %v1800 = vunpack.c.l.b16 %v1696
    %v1801 = vunpack.c.l.b16 %v1697
    %v1802 = vunpack.c.l.b16 %v1698
    %v1803 = vunpack.c.l.b16 %v1699
    %v1804 = vunpack.c.l.b16 %v1700
    %v1805 = vunpack.c.l.b16 %v1701
    %v1806 = vunpack.c.l.b16 %v1702
    %v1807 = vunpack.c.l.b16 %v1703
    %v1808 = vpack.c.b16 %v1761, %v1760
    %v1809 = vpack.c.b16 %v1763, %v1762
    %v1810 = vpack.c.b16 %v1765, %v1764
    %v1811 = vpack.c.b16 %v1767, %v1766
    %v1812 = vpack.c.b16 %v1769, %v1768
    %v1813 = vpack.c.b16 %v1771, %v1770
    %v1814 = vpack.c.b16 %v1773, %v1772
    %v1815 = vpack.c.b16 %v1775, %v1774
    %v1816 = vpack.c.b16 %v1777, %v1776
    %v1817 = vpack.c.b16 %v1779, %v1778
    %v1818 = vpack.c.b16 %v1781, %v1780
    %v1819 = vpack.c.b16 %v1783, %v1782
    %v1820 = vpack.c.b16 %v1785, %v1784
    %v1821 = vpack.c.b16 %v1787, %v1786
    %v1822 = vpack.c.b16 %v1789, %v1788
    %v1823 = vpack.c.b16 %v1791, %v1790
    %v1824 = vpack.c.b16 %v1793, %v1792
    %v1825 = vpack.c.b16 %v1795, %v1794
    %v1826 = vpack.c.b16 %v1797, %v1796
    %v1827 = vpack.c.b16 %v1799, %v1798
    %v1828 = vpack.c.b16 %v1801, %v1800
    %v1829 = vpack.c.b16 %v1803, %v1802
    %v1830 = vpack.c.b16 %v1805, %v1804
    %v1831 = vpack.c.b16 %v1807, %v1806
    %1856 = vmatprep.subr.bf16.mxu0 0
    %1857 = vmatpush1.bf16.msra.mxu0 %v1815
    %1858 = vmatprep.subr.bf16.mxu0 0
    %1859 = vmatpush1.bf16.msra.mxu0 %v1814
    %1860 = vmatprep.subr.bf16.mxu0 0
    %1861 = vmatpush1.bf16.msra.mxu0 %v1813
    %1862 = vmatprep.subr.bf16.mxu0 0
    %1863 = vmatpush1.bf16.msra.mxu0 %v1812
    %1864 = vmatprep.subr.bf16.mxu0 0
    %1865 = vmatpush1.bf16.msra.mxu0 %v1811
    %1866 = vmatprep.subr.bf16.mxu0 0
    %1867 = vmatpush1.bf16.msra.mxu0 %v1810
    %1868 = vmatprep.subr.bf16.mxu0 0
    %1869 = vmatpush1.bf16.msra.mxu0 %v1809
    %1870 = vmatprep.subr.bf16.mxu0 0
    %1871 = vmatpush1.bf16.msra.mxu0 %v1808
    %1872 = vmatprep.subr.bf16.mxu0 0
    %1873 = vmatpush2.bf16.msra.mxu0 %v1823
    %1874 = vmatprep.subr.bf16.mxu0 0
    %1875 = vmatpush2.bf16.msra.mxu0 %v1822
    %1876 = vmatprep.subr.bf16.mxu0 0
    %1877 = vmatpush2.bf16.msra.mxu0 %v1821
    %1878 = vmatprep.subr.bf16.mxu0 0
    %1879 = vmatpush2.bf16.msra.mxu0 %v1820
    %1880 = vmatprep.subr.bf16.mxu0 0
    %1881 = vmatpush2.bf16.msra.mxu0 %v1819
    %1882 = vmatprep.subr.bf16.mxu0 0
    %1883 = vmatpush2.bf16.msra.mxu0 %v1818
    %1884 = vmatprep.subr.bf16.mxu0 0
    %1885 = vmatpush2.bf16.msra.mxu0 %v1817
    %1886 = vmatprep.subr.bf16.mxu0 0
    %1887 = vmatpush2.bf16.msra.mxu0 %v1816
    %1888 = vmatprep.mubr.bf16.mxu0 %v1654
    %1889 = vmatmul.mubr.bf16.gmra.mxu0 %v1653
    %v1890 = vpop.f32.mrf.mxu0
    %v1891 = vadd.f32 %v1711, %v1890
    %v1892 = vpop.f32.mrf.mxu0
    %v1893 = vpop.f32.mrf.mxu0
    %v1894 = vpop.f32.mrf.mxu0
    %1895 = vdwg.mxu0
    %1896 = vmatprep.subr.bf16.mxu0 0
    %1897 = vmatpush1.bf16.msra.mxu0 %v1831
    %1898 = vmatprep.subr.bf16.mxu0 0
    %1899 = vmatpush1.bf16.msra.mxu0 %v1830
    %1900 = vmatprep.subr.bf16.mxu0 0
    %1901 = vmatpush1.bf16.msra.mxu0 %v1829
    %1902 = vmatprep.subr.bf16.mxu0 0
    %1903 = vmatpush1.bf16.msra.mxu0 %v1828
    %1904 = vmatprep.subr.bf16.mxu0 0
    %1905 = vmatpush1.bf16.msra.mxu0 %v1827
    %1906 = vmatprep.subr.bf16.mxu0 0
    %1907 = vmatpush1.bf16.msra.mxu0 %v1826
    %1908 = vmatprep.subr.bf16.mxu0 0
    %1909 = vmatpush1.bf16.msra.mxu0 %v1825
    %1910 = vmatprep.subr.bf16.mxu0 0
    %1911 = vmatpush1.bf16.msra.mxu0 %v1824
    %1912 = vmatprep.subr.bf16.mxu0 0
    %1913 = vmatpush2.bf16.msra.mxu0 0
    %1914 = vmatprep.subr.bf16.mxu0 0
    %1915 = vmatpush2.bf16.msra.mxu0 0
    %1916 = vmatprep.subr.bf16.mxu0 0
    %1917 = vmatpush2.bf16.msra.mxu0 0
    %1918 = vmatprep.subr.bf16.mxu0 0
    %1919 = vmatpush2.bf16.msra.mxu0 0
    %1920 = vmatprep.subr.bf16.mxu0 0
    %1921 = vmatpush2.bf16.msra.mxu0 0
    %1922 = vmatprep.subr.bf16.mxu0 0
    %1923 = vmatpush2.bf16.msra.mxu0 0
    %1924 = vmatprep.subr.bf16.mxu0 0
    %1925 = vmatpush2.bf16.msra.mxu0 0
    %1926 = vmatprep.subr.bf16.mxu0 0
    %1927 = vmatpush2.bf16.msra.mxu0 0
    %1928 = vmatprep.mubr.bf16.mxu0 0
    %1929 = vmatmul.mubr.bf16.gmra.mxu0 %v1655
    %v1930 = vpop.f32.mrf.mxu0
    %v1931 = vadd.f32 %v1891, %v1930
    %v1932 = vpop.f32.mrf.mxu0
    %v1933 = vpop.f32.mrf.mxu0
    %v1934 = vpop.f32.mrf.mxu0
    %1935 = vdwg.mxu0
    %v1936 = vmax.f32 %v1931, 0.0
    %v1937 = vsel %vm1194, %v1936, 0.0
    %v1938 = vrot.slane %v1937, 4
    %v1939 = vadd.f32 %v1937, %v1938
    %v1940 = vrot.slane %v1939, 2
    %v1941 = vadd.f32 %v1939, %v1940
    %v1942 = vrot.slane %v1941, 1
    %v1943 = vadd.f32 %v1941, %v1942
    %v1944 = vmul.f32 %v1936, %v1936
    %v1945 = vsel %vm1194, %v1944, 0.0
    %v1946 = vrot.slane %v1945, 4
    %v1947 = vadd.f32 %v1945, %v1946
    %v1948 = vrot.slane %v1947, 2
    %v1949 = vadd.f32 %v1947, %v1948
    %v1950 = vrot.slane %v1949, 1
    %v1951 = vadd.f32 %v1949, %v1950
    %v1952 = vsel %vm577, %v1943, %v1951
    %v1953 = vld [vmem:[#allocation5 + $0x460] sm:$0xf]
    %v1954 = vld [vmem:[#allocation5 + $0x464] sm:$0xf]
    %v1955 = vld [vmem:[#allocation5 + $0x468] sm:$0xf]
    %v1956 = vld [vmem:[#allocation5 + $0x46c] sm:$0xf]
    %v1957 = vld [vmem:[#allocation5 + $0x470] sm:$0xf]
    %v1958 = vld [vmem:[#allocation5 + $0x474] sm:$0xf]
    %v1959 = vld [vmem:[#allocation5 + $0x478] sm:$0xf]
    %v1960 = vld [vmem:[#allocation5 + $0x47c] sm:$0xf]
    %v1961 = vld [vmem:[#allocation5 + $0x480] sm:$0xf]
    %v1962 = vld [vmem:[#allocation5 + $0x484] sm:$0xf]
    %v1963 = vld [vmem:[#allocation5 + $0x488] sm:$0xf]
    %v1964 = vld [vmem:[#allocation5 + $0x48c] sm:$0xf]
    %v1965 = vld [vmem:[#allocation5 + $0x490] sm:$0xf]
    %v1966 = vld [vmem:[#allocation5 + $0x494] sm:$0xf]
    %v1967 = vld [vmem:[#allocation5 + $0x498] sm:$0xf]
    %v1968 = vld [vmem:[#allocation5 + $0x49c] sm:$0xf]
    %v1969 = vunpack.c.l.bf16 %v1953
    %v1970 = vunpack.c.l.bf16 %v1954
    %v1971 = vunpack.c.l.bf16 %v1955
    %v1972 = vunpack.c.l.bf16 %v1956
    %v1973 = vunpack.c.l.bf16 %v1957
    %v1974 = vunpack.c.l.bf16 %v1958
    %v1975 = vunpack.c.l.bf16 %v1959
    %v1976 = vunpack.c.l.bf16 %v1960
    %v1977 = vunpack.c.l.bf16 %v1961
    %v1978 = vunpack.c.l.bf16 %v1962
    %v1979 = vunpack.c.l.bf16 %v1963
    %v1980 = vunpack.c.l.bf16 %v1964
    %v1981 = vunpack.c.l.bf16 %v1965
    %v1982 = vunpack.c.l.bf16 %v1966
    %v1983 = vunpack.c.l.bf16 %v1967
    %v1984 = vunpack.c.l.bf16 %v1968
    %1985 = vmatprep.subr.mxu0 0.0
    %1986 = vmatpush1.msra.mxu0 %v1984
    %1987 = vmatprep.subr.mxu0 0.0
    %1988 = vmatpush1.msra.mxu0 %v1983
    %1989 = vmatprep.subr.mxu0 0.0
    %1990 = vmatpush1.msra.mxu0 %v1982
    %1991 = vmatprep.subr.mxu0 0.0
    %1992 = vmatpush1.msra.mxu0 %v1981
    %1993 = vmatprep.subr.mxu0 0.0
    %1994 = vmatpush1.msra.mxu0 %v1980
    %1995 = vmatprep.subr.mxu0 0.0
    %1996 = vmatpush1.msra.mxu0 %v1979
    %1997 = vmatprep.subr.mxu0 0.0
    %1998 = vmatpush1.msra.mxu0 %v1978
    %1999 = vmatprep.subr.mxu0 0.0
    %2000 = vmatpush1.msra.mxu0 %v1977
    %2001 = vmatprep.subr.mxu0 0.0
    %2002 = vmatpush1.msra.mxu0 %v1976
    %2003 = vmatprep.subr.mxu0 0.0
    %2004 = vmatpush1.msra.mxu0 %v1975
    %2005 = vmatprep.subr.mxu0 0.0
    %2006 = vmatpush1.msra.mxu0 %v1974
    %2007 = vmatprep.subr.mxu0 0.0
    %2008 = vmatpush1.msra.mxu0 %v1973
    %2009 = vmatprep.subr.mxu0 0.0
    %2010 = vmatpush1.msra.mxu0 %v1972
    %2011 = vmatprep.subr.mxu0 0.0
    %2012 = vmatpush1.msra.mxu0 %v1971
    %2013 = vmatprep.subr.mxu0 0.0
    %2014 = vmatpush1.msra.mxu0 %v1970
    %2015 = vmatprep.subr.mxu0 0.0
    %2016 = vmatpush1.msra.mxu0 %v1969
    %2017 = vmatprep.subr.mxu0 0.0
    %2018 = vmatpush2.msra.mxu0 0.0
    %2019 = vmatprep.subr.mxu0 0.0
    %2020 = vmatpush2.msra.mxu0 0.0
    %2021 = vmatprep.subr.mxu0 0.0
    %2022 = vmatpush2.msra.mxu0 0.0
    %2023 = vmatprep.subr.mxu0 0.0
    %2024 = vmatpush2.msra.mxu0 0.0
    %2025 = vmatprep.subr.mxu0 0.0
    %2026 = vmatpush2.msra.mxu0 0.0
    %2027 = vmatprep.subr.mxu0 0.0
    %2028 = vmatpush2.msra.mxu0 0.0
    %2029 = vmatprep.subr.mxu0 0.0
    %2030 = vmatpush2.msra.mxu0 0.0
    %2031 = vmatprep.subr.mxu0 0.0
    %2032 = vmatpush2.msra.mxu0 0.0
    %2033 = vmatprep.subr.mxu0 0.0
    %2034 = vmatpush2.msra.mxu0 0.0
    %2035 = vmatprep.subr.mxu0 0.0
    %2036 = vmatpush2.msra.mxu0 0.0
    %2037 = vmatprep.subr.mxu0 0.0
    %2038 = vmatpush2.msra.mxu0 0.0
    %2039 = vmatprep.subr.mxu0 0.0
    %2040 = vmatpush2.msra.mxu0 0.0
    %2041 = vmatprep.subr.mxu0 0.0
    %2042 = vmatpush2.msra.mxu0 0.0
    %2043 = vmatprep.subr.mxu0 0.0
    %2044 = vmatpush2.msra.mxu0 0.0
    %2045 = vmatprep.subr.mxu0 0.0
    %2046 = vmatpush2.msra.mxu0 0.0
    %2047 = vmatprep.subr.mxu0 0.0
    %2048 = vmatpush2.msra.mxu0 0.0
    %2049 = vmatprep.mubr.f32.mxu0 0.0
    %2050 = vmatmul.mubr.f32.gmra.mxu0 %v1952
    %v2051 = vpop.f32.mrf.mxu0
    %v2052 = vadd.f32 0.0, %v2051
    %v2053 = vpop.f32.mrf.mxu0
    %2054 = vdwg.mxu0
    %v2055 = vmul.f32 %v2052, 0.125
    %v2056 = vmul.f32 %v2055, %v2055
    %v2058 = vrot.slane %v2056, 7
    %v2060 = vsub.f32 %v2055, %v2058
    %v2061 = vadd.f32 %v2060, 1e-05
    %v2062 = vrsqrt.pop %v2061
    %v2063 = vmul.f32 %v1705, %v2062
    %v2065 = vrot.slane %v2063, 1
    %v2067 = vmul.f32 %v2055, %v2065
    %v2069 = vrot.slane %v2067, 6
    %v2071 = vsub.f32 %v1707, %v2069
    %v2072 = vlaneseq
    %v2073 = vshrl.u32 %v2072, 7
    %v2074 = vsub.s32 1, %v2073
    %v2075 = vrot.slane %v2063, %v2074
    %v2076 = vmul.f32 %v1936, %v2075
    %v2077 = vlaneseq
    %v2078 = vshrl.u32 %v2077, 7
    %v2079 = vsub.s32 2, %v2078
    %v2080 = vrot.slane %v2071, %v2079
    %v2081 = vadd.f32 %v2076, %v2080
    %v2082 = vadd.f32 %v2081, 0.0
    %v2084 = vrot.slane %v2081, 1
    %v2086 = vadd.f32 %v2082, %v2084
    %v2088 = vrot.slane %v2086, 1
    %v2090 = vsel %vm577, %v2086, %v2088
    %v2091 = vld [vmem:[#allocation5 + $0x4a0] sm:$0xf]
    %v2092 = vld [vmem:[#allocation5 + $0x4a4] sm:$0xf]
    %v2093 = vld [vmem:[#allocation5 + $0x4a8] sm:$0xf]
    %v2094 = vld [vmem:[#allocation5 + $0x4ac] sm:$0xf]
    %v2095 = vld [vmem:[#allocation5 + $0x4b0] sm:$0xf]
    %v2096 = vld [vmem:[#allocation5 + $0x4b4] sm:$0xf]
    %v2097 = vld [vmem:[#allocation5 + $0x4b8] sm:$0xf]
    %v2098 = vld [vmem:[#allocation5 + $0x4bc] sm:$0xf]
    %v2099 = vld [vmem:[#allocation5 + $0x4c0] sm:$0xf]
    %v2100 = vld [vmem:[#allocation5 + $0x4c4] sm:$0xf]
    %v2101 = vld [vmem:[#allocation5 + $0x4c8] sm:$0xf]
    %v2102 = vld [vmem:[#allocation5 + $0x4cc] sm:$0xf]
    %v2103 = vld [vmem:[#allocation5 + $0x4d0] sm:$0xf]
    %v2104 = vld [vmem:[#allocation5 + $0x4d4] sm:$0xf]
    %v2105 = vld [vmem:[#allocation5 + $0x4d8] sm:$0xf]
    %v2106 = vld [vmem:[#allocation5 + $0x4dc] sm:$0xf]
    %v2107 = vld [vmem:[#allocation5 + $0x4e0] sm:$0x1]
    %v2108 = vunpack.c.l.bf16 %v2107
    %v2109 = vpack.c.bf16 %v2090, %v2090
    %v2110 = vlaneseq
    %v2111 = vshrl.u32 %v2110, 7
    %v2112 = vsub.s32 0, %v2111
    %v2113 = vrot.slane %v2108, %v2112
    %v2130 = vunpack.c.l.b16 %v2091
    %v2131 = vunpack.c.l.b16 %v2092
    %v2132 = vunpack.c.l.b16 %v2093
    %v2133 = vunpack.c.l.b16 %v2094
    %v2134 = vunpack.c.l.b16 %v2095
    %v2135 = vunpack.c.l.b16 %v2096
    %v2136 = vunpack.c.l.b16 %v2097
    %v2137 = vunpack.c.l.b16 %v2098
    %v2138 = vunpack.c.l.b16 %v2099
    %v2139 = vunpack.c.l.b16 %v2100
    %v2140 = vunpack.c.l.b16 %v2101
    %v2141 = vunpack.c.l.b16 %v2102
    %v2142 = vunpack.c.l.b16 %v2103
    %v2143 = vunpack.c.l.b16 %v2104
    %v2144 = vunpack.c.l.b16 %v2105
    %v2145 = vunpack.c.l.b16 %v2106
    %v2146 = vpack.c.b16 %v2131, %v2130
    %v2147 = vpack.c.b16 %v2133, %v2132
    %v2148 = vpack.c.b16 %v2135, %v2134
    %v2149 = vpack.c.b16 %v2137, %v2136
    %v2150 = vpack.c.b16 %v2139, %v2138
    %v2151 = vpack.c.b16 %v2141, %v2140
    %v2152 = vpack.c.b16 %v2143, %v2142
    %v2153 = vpack.c.b16 %v2145, %v2144
    %2162 = vmatprep.subr.bf16.mxu0 0
    %2163 = vmatpush1.bf16.msra.mxu0 %v2153
    %2164 = vmatprep.subr.bf16.mxu0 0
    %2165 = vmatpush1.bf16.msra.mxu0 %v2152
    %2166 = vmatprep.subr.bf16.mxu0 0
    %2167 = vmatpush1.bf16.msra.mxu0 %v2151
    %2168 = vmatprep.subr.bf16.mxu0 0
    %2169 = vmatpush1.bf16.msra.mxu0 %v2150
    %2170 = vmatprep.subr.bf16.mxu0 0
    %2171 = vmatpush1.bf16.msra.mxu0 %v2149
    %2172 = vmatprep.subr.bf16.mxu0 0
    %2173 = vmatpush1.bf16.msra.mxu0 %v2148
    %2174 = vmatprep.subr.bf16.mxu0 0
    %2175 = vmatpush1.bf16.msra.mxu0 %v2147
    %2176 = vmatprep.subr.bf16.mxu0 0
    %2177 = vmatpush1.bf16.msra.mxu0 %v2146
    %2178 = vmatprep.subr.bf16.mxu0 0
    %2179 = vmatpush2.bf16.msra.mxu0 0
    %2180 = vmatprep.subr.bf16.mxu0 0
    %2181 = vmatpush2.bf16.msra.mxu0 0
    %2182 = vmatprep.subr.bf16.mxu0 0
    %2183 = vmatpush2.bf16.msra.mxu0 0
    %2184 = vmatprep.subr.bf16.mxu0 0
    %2185 = vmatpush2.bf16.msra.mxu0 0
    %2186 = vmatprep.subr.bf16.mxu0 0
    %2187 = vmatpush2.bf16.msra.mxu0 0
    %2188 = vmatprep.subr.bf16.mxu0 0
    %2189 = vmatpush2.bf16.msra.mxu0 0
    %2190 = vmatprep.subr.bf16.mxu0 0
    %2191 = vmatpush2.bf16.msra.mxu0 0
    %2192 = vmatprep.subr.bf16.mxu0 0
    %2193 = vmatpush2.bf16.msra.mxu0 0
    %2194 = vmatprep.mubr.bf16.mxu0 0
    %2195 = vmatmul.mubr.bf16.gmra.mxu0 %v2109
    %v2196 = vpop.f32.mrf.mxu0
    %v2197 = vadd.f32 %v2113, %v2196
    %v2198 = vpop.f32.mrf.mxu0
    %v2199 = vpop.f32.mrf.mxu0
    %v2200 = vpop.f32.mrf.mxu0
    %2201 = vdwg.mxu0
    %vm2202 = vcmask 74752
    %2203 = vst.msk [vmem:[#allocation8] sm:$0x3] %vm2202, %v2197
    // Predicated region
    $region14: #{audio_classifier_forward.1} parent=1 // pred_check
      _
    $region15: #{audio_classifier_forward.1} parent=1 // pred_check_branch
      %2205 = sbr.rel (0) target = $region17
    $region16: #{audio_classifier_forward.1} parent=1 // pred_region
      %s2207 = ssub.s32 32, 32
      %2208 = vsyncadd [#allocation7], %s2207
      %s2210 = sshll.u32 [#allocation8], 4
      %s2211 = int_to_ptr.vmem [resolvable:$true] %s2210
      %2213 = dma.vmem_to_hbm [thread:$0]  %s2211, 32, %s2, [#allocation7]
    $region17: #{audio_classifier_forward.1} parent=1 // pred_fallthru
      _
    // Predicated region
    $region18: #{audio_classifier_forward.1} parent=1 // pred_check
      _
    $region19: #{audio_classifier_forward.1} parent=1 // pred_check_branch
      %2215 = sbr.rel (0) target = $region21
    $region20: #{audio_classifier_forward.1} parent=1 // pred_region
      %2216 = dma.done [#allocation7], 32
    $region21: #{audio_classifier_forward.1} parent=1 // pred_fallthru
      _
    %2217 = vsyncpa [#allocation6], 1
    %2218 = vsyncpa [#allocation7], 1

</llo_original>
